<compile_context>
chip_gen: v6e
topology: v6e:2x2x1
jax: 0.10.0
libtpu: 0.0.40
codegen_flags: <defaults>
</compile_context>

<pallas_src>
import jax
import jax.numpy as jnp
from jax import lax
from jax.experimental import pallas as pl
from jax.experimental.pallas import tpu as pltpu


def _swiglu_ffn_kernel(x_ref, w1_ref, w2_ref, b1_ref, b2_ref, w3_ref, b3_ref,
                       o_ref, acc_ref):
    """One (tm, E) token tile x one th-wide hidden chunk.

    x_ref  : (tm, E)  token tile (resident across the H axis)
    w1_ref : (th, E)  rows [h*th, (h+1)*th)       of W12 (gate weights)
    w2_ref : (th, E)  rows [H + h*th, H+(h+1)*th) of W12 (value weights)
    b1_ref : (1, th)  matching slice of b12
    b2_ref : (1, th)  matching slice of b12
    w3_ref : (E, th)  columns [h*th, (h+1)*th) of W3
    b3_ref : (1, E)   output bias
    o_ref  : (tm, E)  output tile (resident across the H axis)
    acc_ref: (tm, E)  f32 accumulator scratch
    """
    h_idx = pl.program_id(1)

    @pl.when(h_idx == 0)
    def _():
        acc_ref[...] = jnp.zeros_like(acc_ref)

    x = x_ref[...]

    # Contract the last dim of both operands: (tm, E) x (th, E) -> (tm, th),
    # i.e. x @ W^T with the weight kept in nn.Linear (out, in) layout.
    dn = (((1,), (1,)), ((), ()))
    x1 = lax.dot_general(x, w1_ref[...], dn, preferred_element_type=jnp.float32)
    x1 = x1 + b1_ref[...].astype(jnp.float32)
    x2 = lax.dot_general(x, w2_ref[...], dn, preferred_element_type=jnp.float32)
    x2 = x2 + b2_ref[...].astype(jnp.float32)

    # SwiGLU gate in f32 (sigmoid runs on the EUP, mul on the VPU).
    hidden = (x1 * jax.nn.sigmoid(x1)) * x2

    # Partial second matmul: (tm, th) x (E, th) -> (tm, E), accumulated in f32.
    acc_ref[...] += lax.dot_general(hidden.astype(w3_ref.dtype), w3_ref[...],
                                    dn, preferred_element_type=jnp.float32)

    @pl.when(h_idx == pl.num_programs(1) - 1)
    def _():
        out = acc_ref[...] + b3_ref[...].astype(jnp.float32)
        out = out + x.astype(jnp.float32)        # residual (identity = x)
        o_ref[...] = out.astype(o_ref.dtype)


def swiglu_ffn(x, w12, b12, w3, b3, *, tm=256, th=None, weight_dtype=None,
               vmem_limit_bytes=None):
    """Fused SwiGLU FFN + residual.

    x   : (B, N, E) tokens (channels_last, as in the PyTorch module)
    w12 : (2H, E), b12: (2H,)   nn.Linear(E -> 2H) params, (out, in) layout
    w3  : (E, H),  b3:  (E,)    nn.Linear(H -> E) params
    tm  : token tile size (256 for v6e/v7x, 128 for v5e)
    th  : hidden-chunk size; None keeps full H resident (v6e), a smaller
          divisor of H bounds weight VMEM (v7x 64 MiB / v5e small scoped VMEM)
    weight_dtype : dtype fed to the MXU (None -> x.dtype; use jnp.bfloat16 in
          production to halve weight VMEM/HBM traffic at full MXU rate)
    vmem_limit_bytes : raise the scoped VMEM limit (e.g. on v5e) if weights
          are kept resident.
    """
    B, N, E = x.shape
    two_h, e_in = w12.shape
    H = two_h // 2
    e_out, h_in = w3.shape
    assert e_in == E and h_in == H and 2 * H == two_h
    assert e_out == E, "kernel assumes residual path (out_dims == embed_dims)"

    if weight_dtype is None:
        weight_dtype = x.dtype
    if th is None:
        th = H
    assert H % th == 0, "th must divide the hidden dimension"
    h_tiles = H // th

    M = B * N
    m_tiles = pl.cdiv(M, tm)
    M_pad = m_tiles * tm

    x2d = x.reshape(M, E)
    if M_pad != M:
        # Pad the token axis so tm is never forced down to a divisor of M;
        # padded rows are computed and discarded (each row is independent).
        x2d = jnp.pad(x2d, ((0, M_pad - M), (0, 0)))

    w12c = w12.astype(weight_dtype)      # (2H, E): no transpose, no split
    w3c = w3.astype(weight_dtype)        # (E, H):  no transpose
    b12r = b12.reshape(1, two_h)
    b3r = b3.reshape(1, E)

    wbytes = (w12c.size + w3c.size) * jnp.dtype(weight_dtype).itemsize
    xbytes = M_pad * E * x.dtype.itemsize
    cost = pl.CostEstimate(
        flops=2 * M_pad * (2 * H) * E + 2 * M_pad * H * E,
        transcendentals=M_pad * H,
        bytes_accessed=2 * xbytes + m_tiles * wbytes,
    )

    out2d = pl.pallas_call(
        _swiglu_ffn_kernel,
        out_shape=jax.ShapeDtypeStruct((M_pad, E), x.dtype),
        grid_spec=pltpu.PrefetchScalarGridSpec(
            num_scalar_prefetch=0,
            grid=(m_tiles, h_tiles),      # M parallel first, H reduction last
            in_specs=[
                pl.BlockSpec((tm, E), lambda i, h: (i, 0)),            # x tile
                pl.BlockSpec((th, E), lambda i, h: (h, 0)),            # W1 rows
                pl.BlockSpec((th, E), lambda i, h: (h_tiles + h, 0)),  # W2 rows
                pl.BlockSpec((1, th), lambda i, h: (0, h)),            # b1
                pl.BlockSpec((1, th), lambda i, h: (0, h_tiles + h)),  # b2
                pl.BlockSpec((E, th), lambda i, h: (0, h)),            # W3 cols
                pl.BlockSpec((1, E), lambda i, h: (0, 0)),             # b3
            ],
            out_specs=pl.BlockSpec((tm, E), lambda i, h: (i, 0)),
            scratch_shapes=[pltpu.VMEM((tm, E), jnp.float32)],
        ),
        compiler_params=pltpu.CompilerParams(
            dimension_semantics=("parallel", "arbitrary"),
            vmem_limit_bytes=vmem_limit_bytes,
        ),
        cost_estimate=cost,
    )(x2d, w12c, w12c, b12r, b12r, w3c, b3r)

    if M_pad != M:
        out2d = out2d[:M]
    return out2d.reshape(B, N, E)


def swiglu_ffn_ref(x, w12, b12, w3, b3):
    """Plain-JAX reference matching the PyTorch forward."""
    x12 = jnp.einsum("bne,he->bnh", x, w12) + b12
    h = x12.shape[-1] // 2
    x1, x2 = x12[..., :h], x12[..., h:]
    hidden = jax.nn.silu(x1) * x2
    out = jnp.einsum("bnh,eh->bne", hidden, w3) + b3
    return x + out


if __name__ == "__main__":
    # Small, lane-aligned shapes consistent with the module: (B, N, C) tokens.
    B, N = 2, 8
    embed_dims = 128            # E
    hidden_dims = 256           # feedforward_channels (H)

    key = jax.random.PRNGKey(0)
    kx, k1, k2, k3, k4 = jax.random.split(key, 5)

    x = jax.random.normal(kx, (B, N, embed_dims), dtype=jnp.float32)
    # nn.Linear parameter layout: weight (out, in), bias (out,)
    w12 = jax.random.normal(k1, (2 * hidden_dims, embed_dims), jnp.float32) * 0.05
    b12 = jax.random.normal(k2, (2 * hidden_dims,), jnp.float32) * 0.05
    w3 = jax.random.normal(k3, (embed_dims, hidden_dims), jnp.float32) * 0.05
    b3 = jax.random.normal(k4, (embed_dims,), jnp.float32) * 0.05

    # Exercise both the padded-M path (M=16 -> one 256-row tile) and the
    # H-chunked accumulation path (H=256 split into two 128-wide chunks).
    out = swiglu_ffn(x, w12, b12, w3, b3, tm=256, th=128)
    out = jax.block_until_ready(out)

    ref = jax.block_until_ready(swiglu_ffn_ref(x, w12, b12, w3, b3))

    assert out.shape == (B, N, embed_dims)
    assert jnp.allclose(out, ref, atol=2e-3, rtol=2e-3), (
        "mismatch vs reference, max abs err = "
        f"{float(jnp.max(jnp.abs(out - ref)))}")

    print("KERNEL_OK")
</pallas_src>

<mosaic_0001>
module attributes {stable_mosaic.version = 11 : i64} {
  func.func @_swiglu_ffn_kernel(%arg0: i32, %arg1: i32, %arg2: memref<256x128xf32, #tpu.memory_space<vmem>>, %arg3: memref<128x128xf32, #tpu.memory_space<vmem>>, %arg4: memref<128x128xf32, #tpu.memory_space<vmem>>, %arg5: memref<1x128xf32, #tpu.memory_space<vmem>>, %arg6: memref<1x128xf32, #tpu.memory_space<vmem>>, %arg7: memref<128x128xf32, #tpu.memory_space<vmem>>, %arg8: memref<1x128xf32, #tpu.memory_space<vmem>>, %arg9: memref<256x128xf32, #tpu.memory_space<vmem>>, %arg10: memref<256x128xf32, #tpu.memory_space<vmem>>) attributes {dimension_semantics = [#tpu.dimension_semantics<parallel>, #tpu.dimension_semantics<arbitrary>], iteration_bounds = array<i64: 1, 2>, scalar_prefetch = 0 : i64, scratch_operands = 1 : i64, tpu.core_type = #tpu.core_type<tc>, window_params = [{transform_indices = @transform_0, window_bounds = array<i64: 256, 128>}, {transform_indices = @transform_1, window_bounds = array<i64: 128, 128>}, {transform_indices = @transform_2, window_bounds = array<i64: 128, 128>}, {transform_indices = @transform_3, window_bounds = array<i64: 1, 128>}, {transform_indices = @transform_4, window_bounds = array<i64: 1, 128>}, {transform_indices = @transform_5, window_bounds = array<i64: 128, 128>}, {pipeline_mode = #tpu.pipeline_mode<synchronous>, transform_indices = @transform_6, window_bounds = array<i64: 1, 128>}, {transform_indices = @transform_7, window_bounds = array<i64: 256, 128>}]} {
    %c0_i32 = arith.constant 0 : i32
    %0 = arith.cmpi eq, %arg1, %c0_i32 : i32
    %1 = arith.extui %0 : i1 to i32
    %c0_i32_0 = arith.constant 0 : i32
    %2 = arith.cmpi ne, %1, %c0_i32_0 : i32
    scf.if %2 {
      %cst_20 = arith.constant 0.000000e+00 : f32
      %29 = vector.broadcast %cst_20 : f32 to vector<256x128xf32>
      %c0_21 = arith.constant 0 : index
      %c0_22 = arith.constant 0 : index
      %30 = vector.load %arg10[%c0_21, %c0_22] : memref<256x128xf32, #tpu.memory_space<vmem>>, vector<256x128xf32>
      tpu.vector_store %arg10[%c0_21, %c0_22], %29 {strides = array<i32>} : memref<256x128xf32, #tpu.memory_space<vmem>>, vector<256x128xf32>,
    } else {
    }
    %c0 = arith.constant 0 : index
    %c0_1 = arith.constant 0 : index
    %3 = vector.load %arg2[%c0, %c0_1] : memref<256x128xf32, #tpu.memory_space<vmem>>, vector<256x128xf32>
    %c0_2 = arith.constant 0 : index
    %c0_3 = arith.constant 0 : index
    %4 = vector.load %arg3[%c0_2, %c0_3] : memref<128x128xf32, #tpu.memory_space<vmem>>, vector<128x128xf32>
    %cst = arith.constant dense<0.000000e+00> : vector<256x128xf32>
    %5 = tpu.matmul %3, %4, %cst {dimension_numbers = #tpu.dot_dimension_numbers<[1], [1], [0], [0], [0, 0, 1, 0], [], []>} : vector<256x128xf32>, vector<128x128xf32>, vector<256x128xf32> -> vector<256x128xf32>
    %c0_4 = arith.constant 0 : index
    %c0_5 = arith.constant 0 : index
    %6 = vector.load %arg5[%c0_4, %c0_5] : memref<1x128xf32, #tpu.memory_space<vmem>>, vector<1x128xf32>
    %7 = vector.broadcast %6 : vector<1x128xf32> to vector<256x128xf32>
    %8 = arith.addf %5, %7 : vector<256x128xf32>
    %c0_6 = arith.constant 0 : index
    %c0_7 = arith.constant 0 : index
    %9 = vector.load %arg4[%c0_6, %c0_7] : memref<128x128xf32, #tpu.memory_space<vmem>>, vector<128x128xf32>
    %cst_8 = arith.constant dense<0.000000e+00> : vector<256x128xf32>
    %10 = tpu.matmul %3, %9, %cst_8 {dimension_numbers = #tpu.dot_dimension_numbers<[1], [1], [0], [0], [0, 0, 1, 0], [], []>} : vector<256x128xf32>, vector<128x128xf32>, vector<256x128xf32> -> vector<256x128xf32>
    %c0_9 = arith.constant 0 : index
    %c0_10 = arith.constant 0 : index
    %11 = vector.load %arg6[%c0_9, %c0_10] : memref<1x128xf32, #tpu.memory_space<vmem>>, vector<1x128xf32>
    %12 = vector.broadcast %11 : vector<1x128xf32> to vector<256x128xf32>
    %13 = arith.addf %10, %12 : vector<256x128xf32>
    %14 = arith.negf %8 : vector<256x128xf32>
    %15 = math.exp %14 : vector<256x128xf32>
    %cst_11 = arith.constant 1.000000e+00 : f32
    %16 = vector.broadcast %cst_11 : f32 to vector<256x128xf32>
    %17 = arith.addf %16, %15 : vector<256x128xf32>
    %18 = arith.divf %16, %17 : vector<256x128xf32>
    %19 = arith.mulf %8, %18 : vector<256x128xf32>
    %20 = arith.mulf %19, %13 : vector<256x128xf32>
    %c0_12 = arith.constant 0 : index
    %c0_13 = arith.constant 0 : index
    %21 = vector.load %arg10[%c0_12, %c0_13] : memref<256x128xf32, #tpu.memory_space<vmem>>, vector<256x128xf32>
    %c0_14 = arith.constant 0 : index
    %c0_15 = arith.constant 0 : index
    %22 = vector.load %arg7[%c0_14, %c0_15] : memref<128x128xf32, #tpu.memory_space<vmem>>, vector<128x128xf32>
    %cst_16 = arith.constant dense<0.000000e+00> : vector<256x128xf32>
    %23 = tpu.matmul %20, %22, %cst_16 {dimension_numbers = #tpu.dot_dimension_numbers<[1], [1], [0], [0], [0, 0, 1, 0], [], []>} : vector<256x128xf32>, vector<128x128xf32>, vector<256x128xf32> -> vector<256x128xf32>
    %24 = arith.addf %21, %23 : vector<256x128xf32>
    %c0_17 = arith.constant 0 : index
    %c0_18 = arith.constant 0 : index
    %25 = vector.load %arg10[%c0_17, %c0_18] : memref<256x128xf32, #tpu.memory_space<vmem>>, vector<256x128xf32>
    tpu.vector_store %arg10[%c0_17, %c0_18], %24 {strides = array<i32>} : memref<256x128xf32, #tpu.memory_space<vmem>>, vector<256x128xf32>,
    %c1_i32 = arith.constant 1 : i32
    %26 = arith.cmpi eq, %arg1, %c1_i32 : i32
    %27 = arith.extui %26 : i1 to i32
    %c0_i32_19 = arith.constant 0 : i32
    %28 = arith.cmpi ne, %27, %c0_i32_19 : i32
    scf.if %28 {
      %c0_20 = arith.constant 0 : index
      %c0_21 = arith.constant 0 : index
      %29 = vector.load %arg10[%c0_20, %c0_21] : memref<256x128xf32, #tpu.memory_space<vmem>>, vector<256x128xf32>
      %c0_22 = arith.constant 0 : index
      %c0_23 = arith.constant 0 : index
      %30 = vector.load %arg8[%c0_22, %c0_23] : memref<1x128xf32, #tpu.memory_space<vmem>>, vector<1x128xf32>
      %31 = vector.broadcast %30 : vector<1x128xf32> to vector<256x128xf32>
      %32 = arith.addf %29, %31 : vector<256x128xf32>
      %33 = arith.addf %32, %3 : vector<256x128xf32>
      %c0_24 = arith.constant 0 : index
      %c0_25 = arith.constant 0 : index
      %34 = vector.load %arg9[%c0_24, %c0_25] : memref<256x128xf32, #tpu.memory_space<vmem>>, vector<256x128xf32>
      tpu.vector_store %arg9[%c0_24, %c0_25], %33 {strides = array<i32>} : memref<256x128xf32, #tpu.memory_space<vmem>>, vector<256x128xf32>,
    } else {
    }
    return
  }
  func.func @transform_0(%arg0: i32, %arg1: i32) -> (i32, i32) {
    %c0_i32 = arith.constant 0 : i32
    %c0_i32_0 = arith.constant 0 : i32
    return %arg0, %c0_i32 : i32, i32
  }
  func.func @transform_1(%arg0: i32, %arg1: i32) -> (i32, i32) {
    %c0_i32 = arith.constant 0 : i32
    %c0_i32_0 = arith.constant 0 : i32
    return %arg1, %c0_i32 : i32, i32
  }
  func.func @transform_2(%arg0: i32, %arg1: i32) -> (i32, i32) {
    %c2_i32 = arith.constant 2 : i32
    %0 = arith.addi %c2_i32, %arg1 : i32
    %c0_i32 = arith.constant 0 : i32
    %c0_i32_0 = arith.constant 0 : i32
    return %0, %c0_i32 : i32, i32
  }
  func.func @transform_3(%arg0: i32, %arg1: i32) -> (i32, i32) {
    %c0_i32 = arith.constant 0 : i32
    %c0_i32_0 = arith.constant 0 : i32
    return %c0_i32, %arg1 : i32, i32
  }
  func.func @transform_4(%arg0: i32, %arg1: i32) -> (i32, i32) {
    %c2_i32 = arith.constant 2 : i32
    %0 = arith.addi %c2_i32, %arg1 : i32
    %c0_i32 = arith.constant 0 : i32
    %c0_i32_0 = arith.constant 0 : i32
    return %c0_i32, %0 : i32, i32
  }
  func.func @transform_5(%arg0: i32, %arg1: i32) -> (i32, i32) {
    %c0_i32 = arith.constant 0 : i32
    %c0_i32_0 = arith.constant 0 : i32
    return %c0_i32, %arg1 : i32, i32
  }
  func.func @transform_6(%arg0: i32, %arg1: i32) -> (i32, i32) {
    %c0_i32 = arith.constant 0 : i32
    %c0_i32_0 = arith.constant 0 : i32
    %c0_i32_1 = arith.constant 0 : i32
    return %c0_i32, %c0_i32_0 : i32, i32
  }
  func.func @transform_7(%arg0: i32, %arg1: i32) -> (i32, i32) {
    %c0_i32 = arith.constant 0 : i32
    %c0_i32_0 = arith.constant 0 : i32
    return %arg0, %c0_i32 : i32, i32
  }
}

</mosaic_0001>

<llo_original>
// kernel: tpu_custom_call.1
$region0: #{tpu_custom_call.1}
  #allocation0 [shape = 'u32[]', space=smem, size = 0x4, offset = 0x4, fixed_abs, tag = 'smem constant byte address 0x4 - core index']
  #allocation1 [shape = 'u32[144,128]{1,0:T(1,128)}', space=vmem, size = 0x12000, scoped, tag = 'internal scratch']
  #allocation2 [shape = 'f32[256,128]{1,0:T(8,128)}', space=vmem, size = 0x20000, scoped, tag = 'scratch operand']
  %s0 = inlined_call_operand.hbm [shape: f32[256,128], index: 0, kind: input, shape index: {}]
  %s1 = inlined_call_operand.hbm [shape: f32[512,128], index: 1, kind: input, shape index: {}]
  %s2 = inlined_call_operand.hbm [shape: f32[512,128], index: 2, kind: input, shape index: {}]
  %s3 = inlined_call_operand.vmem [shape: f32[1,512], index: 3, kind: input, shape index: {}]
  %s4 = inlined_call_operand.hbm [shape: f32[1,512], index: 4, kind: input, shape index: {}]
  %s5 = inlined_call_operand.hbm [shape: f32[128,256], index: 5, kind: input, shape index: {}]
  %s6 = inlined_call_operand.vmem [shape: f32[1,128], index: 6, kind: input, shape index: {}]
  %s7 = inlined_call_operand.hbm [shape: f32[256,128], index: 7, kind: output, shape index: {}]
  %s8 = sld [smem:[#allocation0]]
  $region89: #{tpu_custom_call.1} parent=0
    _
  %s10 = ssub.s32 1, %s8
  %s11 = scalar_select 0, %s10, %s8
  $region1: #{tpu_custom_call.1} parent=0
    #allocation3 [shape = 'u8[131072]{0}', space=vmem, size = 0x20000, scoped, tag = 'input window, operand 0, single buffered']
    #allocation4 [shape = 's32[2]{0}', space=sflag, size = 0x8, scoped, tag = 'scoped memory for tpu_custom_call.1']
    #allocation5 [shape = 's32[2]{0}', space=sflag, size = 0x8, scoped, tag = 'scoped memory for tpu_custom_call.1']
    #allocation6 [shape = 'u8[131072]{0}', space=vmem, size = 0x20000, scoped, tag = 'input window, operand 1']
    #allocation7 [shape = 's32[2]{0}', space=sflag, size = 0x8, scoped, tag = 'scoped memory for tpu_custom_call.1']
    #allocation8 [shape = 'u8[131072]{0}', space=vmem, size = 0x20000, scoped, tag = 'input window, operand 2']
    #allocation9 [shape = 'u8[1024]{0}', space=vmem, size = 0x400, scoped, tag = 'input window, operand 4']
    #allocation10 [shape = 's32[2]{0}', space=sflag, size = 0x8, scoped, tag = 'scoped memory for tpu_custom_call.1']
    #allocation11 [shape = 'u8[131072]{0}', space=vmem, size = 0x20000, scoped, tag = 'input window, operand 5']
    #allocation12 [shape = 'u8[131072]{0}', space=vmem, size = 0x20000, scoped, tag = 'output window, operand 0, single buffered']
    %12 = vsyncpa [#allocation4], 0
    %13 = vsyncpa [#allocation7], 0
    %s14 = scalar_lea.sflag [#allocation7], 1
    %15 = vsyncpa %s14, 0
    %16 = vsyncpa [#allocation10], 0
    %s17 = scalar_lea.sflag [#allocation10], 1
    %18 = vsyncpa %s17, 0
    %19 = vsyncpa [#allocation5], 0
    loop: start=0, step=1, limit=4
    $region2: #{tpu_custom_call.1} parent=1 // loop_pre_header
      _
    $region3: #{tpu_custom_call.1} parent=1 // loop_header
      %s21 = sphi 0, %s25
      %p22 = scmp.ge.s32.totalorder %s21, 4
      %s28 = sphi 0, %s40
      %s29 = sphi 0, %s36
      %s30 = sphi 0, %s28
      %s31 = sphi 0, %s29
      %s32 = sphi 0, %s30
      %s33 = sphi 0, %s31
      %s43 = sphi 0, %s45
      %s46 = sphi 0, %s43
      %s47 = sphi 0, %s46
      %s63 = sphi 0, %s47
      %s69 = sphi 0, %s71
      %s72 = sphi 0, %s69
      %s73 = sphi 0, %s72
      %s89 = sphi 0, %s73
      %s97 = sphi 0, %s99
      %s100 = sphi 0, %s97
      %s101 = sphi 0, %s100
      %s117 = sphi 0, %s101
      %s123 = sphi 0, %s125
      %s126 = sphi 0, %s123
      %s127 = sphi 0, %s126
      %s143 = sphi 0, %s127
      %s151 = sphi 0, %s153
      %s154 = sphi 0, %s151
      %s155 = sphi 0, %s154
      %s171 = sphi 0, %s155
      %s177 = sphi 0, %s179
      %s180 = sphi 0, %s177
      %s181 = sphi 0, %s180
      %s197 = sphi 0, %s181
      %s201 = sphi 0, %s201
      %s203 = sphi 0, %s201
      %s204 = sphi 0, %s203
      %s218 = sphi 0, %s204
      %s224 = sphi 0, %s226
      %s227 = sphi 0, %s224
      %s228 = sphi 0, %s227
      %s244 = sphi 0, %s228
    $region4: #{tpu_custom_call.1} parent=1 // loop_header_branch
      %24 = sbr.rel (%p22) target = $region8
    $region5: #{tpu_custom_call.1} parent=1 // loop_body
      %s26 = ssub.s32 %s21, 1
      %s27 = ssub.s32 %s21, 2
      %s34 = sadd.s32 1, %s29
      %p35 = scmp.ge.s32.totalorder %s34, 2
      %s36 = scalar_select %p35, 0, %s34
      %s37 = sadd.s32 1, %s28
      %s38 = scalar_select %p35, %s37, %s28
      %p39 = scmp.ge.s32.totalorder %s38, 1
      %s40 = scalar_select %p39, 0, %s38
      %s41 = ssub.s32 %s28, %s40
      %p42 = scmp.eq.s32.totalorder %s41, 0
      %s44 = sadd.s32 %s43, 1
      %s45 = scalar_select %p42, %s43, %s44
      %p48 = pneg %p42
      %p49 = scmp.eq.s32.totalorder %s21, 1
      %p50 = por %p48, %p49
      %p51 = scmp.ne.s32.totalorder %s43, %s46
      %p52 = scmp.eq.s32.totalorder %s21, 0
      %p53 = por %p51, %p52
      %p54 = scmp.ne.s32.totalorder %s43, %s46
      %p55 = scmp.eq.s32.totalorder %s26, 1
      %p56 = por %p54, %p55
      %p57 = scmp.ne.s32.totalorder %s46, %s47
      %p58 = scmp.eq.s32.totalorder %s26, 0
      %p59 = por %p57, %p58
      %p60 = scmp.ne.s32.totalorder %s46, %s47
      %p61 = scmp.eq.s32.totalorder %s27, 1
      %p62 = por %p60, %p61
      %p64 = scmp.ne.s32.totalorder %s47, %s63
      %p65 = scmp.eq.s32.totalorder %s27, 0
      %p66 = por %p64, %p65
      %s67 = ssub.s32 %s29, %s36
      %p68 = scmp.eq.s32.totalorder %s67, 0
      %s70 = sadd.s32 %s69, 1
      %s71 = scalar_select %p68, %s69, %s70
      %p74 = pneg %p68
      %p75 = scmp.eq.s32.totalorder %s21, 1
      %p76 = por %p74, %p75
      %p77 = scmp.ne.s32.totalorder %s69, %s72
      %p78 = scmp.eq.s32.totalorder %s21, 0
      %p79 = por %p77, %p78
      %p80 = scmp.ne.s32.totalorder %s69, %s72
      %p81 = scmp.eq.s32.totalorder %s26, 1
      %p82 = por %p80, %p81
      %p83 = scmp.ne.s32.totalorder %s72, %s73
      %p84 = scmp.eq.s32.totalorder %s26, 0
      %p85 = por %p83, %p84
      %p86 = scmp.ne.s32.totalorder %s72, %s73
      %p87 = scmp.eq.s32.totalorder %s27, 1
      %p88 = por %p86, %p87
      %p90 = scmp.ne.s32.totalorder %s73, %s89
      %p91 = scmp.eq.s32.totalorder %s27, 0
      %p92 = por %p90, %p91
      %s93 = sadd.s32 %s29, 2
      %s94 = sadd.s32 %s36, 2
      %s95 = ssub.s32 %s93, %s94
      %p96 = scmp.eq.s32.totalorder %s95, 0
      %s98 = sadd.s32 %s97, 1
      %s99 = scalar_select %p96, %s97, %s98
      %p102 = pneg %p96
      %p103 = scmp.eq.s32.totalorder %s21, 1
      %p104 = por %p102, %p103
      %p105 = scmp.ne.s32.totalorder %s97, %s100
      %p106 = scmp.eq.s32.totalorder %s21, 0
      %p107 = por %p105, %p106
      %p108 = scmp.ne.s32.totalorder %s97, %s100
      %p109 = scmp.eq.s32.totalorder %s26, 1
      %p110 = por %p108, %p109
      %p111 = scmp.ne.s32.totalorder %s100, %s101
      %p112 = scmp.eq.s32.totalorder %s26, 0
      %p113 = por %p111, %p112
      %p114 = scmp.ne.s32.totalorder %s100, %s101
      %p115 = scmp.eq.s32.totalorder %s27, 1
      %p116 = por %p114, %p115
      %p118 = scmp.ne.s32.totalorder %s101, %s117
      %p119 = scmp.eq.s32.totalorder %s27, 0
      %p120 = por %p118, %p119
      %s121 = ssub.s32 %s29, %s36
      %p122 = scmp.eq.s32.totalorder %s121, 0
      %s124 = sadd.s32 %s123, 1
      %s125 = scalar_select %p122, %s123, %s124
      %p128 = pneg %p122
      %p129 = scmp.eq.s32.totalorder %s21, 1
      %p130 = por %p128, %p129
      %p131 = scmp.ne.s32.totalorder %s123, %s126
      %p132 = scmp.eq.s32.totalorder %s21, 0
      %p133 = por %p131, %p132
      %p134 = scmp.ne.s32.totalorder %s123, %s126
      %p135 = scmp.eq.s32.totalorder %s26, 1
      %p136 = por %p134, %p135
      %p137 = scmp.ne.s32.totalorder %s126, %s127
      %p138 = scmp.eq.s32.totalorder %s26, 0
      %p139 = por %p137, %p138
      %p140 = scmp.ne.s32.totalorder %s126, %s127
      %p141 = scmp.eq.s32.totalorder %s27, 1
      %p142 = por %p140, %p141
      %p144 = scmp.ne.s32.totalorder %s127, %s143
      %p145 = scmp.eq.s32.totalorder %s27, 0
      %p146 = por %p144, %p145
      %s147 = sadd.s32 %s29, 2
      %s148 = sadd.s32 %s36, 2
      %s149 = ssub.s32 %s147, %s148
      %p150 = scmp.eq.s32.totalorder %s149, 0
      %s152 = sadd.s32 %s151, 1
      %s153 = scalar_select %p150, %s151, %s152
      %p156 = pneg %p150
      %p157 = scmp.eq.s32.totalorder %s21, 1
      %p158 = por %p156, %p157
      %p159 = scmp.ne.s32.totalorder %s151, %s154
      %p160 = scmp.eq.s32.totalorder %s21, 0
      %p161 = por %p159, %p160
      %p162 = scmp.ne.s32.totalorder %s151, %s154
      %p163 = scmp.eq.s32.totalorder %s26, 1
      %p164 = por %p162, %p163
      %p165 = scmp.ne.s32.totalorder %s154, %s155
      %p166 = scmp.eq.s32.totalorder %s26, 0
      %p167 = por %p165, %p166
      %p168 = scmp.ne.s32.totalorder %s154, %s155
      %p169 = scmp.eq.s32.totalorder %s27, 1
      %p170 = por %p168, %p169
      %p172 = scmp.ne.s32.totalorder %s155, %s171
      %p173 = scmp.eq.s32.totalorder %s27, 0
      %p174 = por %p172, %p173
      %s175 = ssub.s32 %s29, %s36
      %p176 = scmp.eq.s32.totalorder %s175, 0
      %s178 = sadd.s32 %s177, 1
      %s179 = scalar_select %p176, %s177, %s178
      %p182 = pneg %p176
      %p183 = scmp.eq.s32.totalorder %s21, 1
      %p184 = por %p182, %p183
      %p185 = scmp.ne.s32.totalorder %s177, %s180
      %p186 = scmp.eq.s32.totalorder %s21, 0
      %p187 = por %p185, %p186
      %p188 = scmp.ne.s32.totalorder %s177, %s180
      %p189 = scmp.eq.s32.totalorder %s26, 1
      %p190 = por %p188, %p189
      %p191 = scmp.ne.s32.totalorder %s180, %s181
      %p192 = scmp.eq.s32.totalorder %s26, 0
      %p193 = por %p191, %p192
      %p194 = scmp.ne.s32.totalorder %s180, %s181
      %p195 = scmp.eq.s32.totalorder %s27, 1
      %p196 = por %p194, %p195
      %p198 = scmp.ne.s32.totalorder %s181, %s197
      %p199 = scmp.eq.s32.totalorder %s27, 0
      %p200 = por %p198, %p199
      %s202 = sadd.s32 %s201, 1
      %p205 = scmp.eq.s32.totalorder %s21, 1
      %p206 = scmp.ne.s32.totalorder %s201, %s203
      %p207 = scmp.eq.s32.totalorder %s21, 0
      %p208 = por %p206, %p207
      %p209 = scmp.ne.s32.totalorder %s201, %s203
      %p210 = scmp.eq.s32.totalorder %s26, 1
      %p211 = por %p209, %p210
      %p212 = scmp.ne.s32.totalorder %s203, %s204
      %p213 = scmp.eq.s32.totalorder %s26, 0
      %p214 = por %p212, %p213
      %p215 = scmp.ne.s32.totalorder %s203, %s204
      %p216 = scmp.eq.s32.totalorder %s27, 1
      %p217 = por %p215, %p216
      %p219 = scmp.ne.s32.totalorder %s204, %s218
      %p220 = scmp.eq.s32.totalorder %s27, 0
      %p221 = por %p219, %p220
      %s222 = ssub.s32 %s28, %s40
      %p223 = scmp.eq.s32.totalorder %s222, 0
      %s225 = sadd.s32 %s224, 1
      %s226 = scalar_select %p223, %s224, %s225
      %p229 = pneg %p223
      %p230 = scmp.eq.s32.totalorder %s21, 1
      %p231 = por %p229, %p230
      %p232 = scmp.ne.s32.totalorder %s224, %s227
      %p233 = scmp.eq.s32.totalorder %s21, 0
      %p234 = por %p232, %p233
      %p235 = scmp.ne.s32.totalorder %s224, %s227
      %p236 = scmp.eq.s32.totalorder %s26, 1
      %p237 = por %p235, %p236
      %p238 = scmp.ne.s32.totalorder %s227, %s228
      %p239 = scmp.eq.s32.totalorder %s26, 0
      %p240 = por %p238, %p239
      %p241 = scmp.ne.s32.totalorder %s227, %s228
      %p242 = scmp.eq.s32.totalorder %s27, 1
      %p243 = por %p241, %p242
      %p245 = scmp.ne.s32.totalorder %s228, %s244
      %p246 = scmp.eq.s32.totalorder %s27, 0
      %p247 = por %p245, %p246
      %p248 = scmp.le.s32.totalorder 1, %s21
      %p249 = scmp.lt.s32.totalorder %s21, 3
      %p250 = pnand %p248, %p249
      %p251 = pneg %p250
      // Predicated region
      $region9: #{tpu_custom_call.1} parent=5 // pred_check
        _
      $region10: #{tpu_custom_call.1} parent=5 // pred_check_branch
        %253 = sbr.rel (%p250) target = $region12
      $region11: #{tpu_custom_call.1} parent=5 // pred_region
        %s254 = ssub.s32 %s21, 1
        // Predicated region
        $region13: #{tpu_custom_call.1} parent=11 // pred_check
          %p255 = pneg %p59
        $region14: #{tpu_custom_call.1} parent=11 // pred_check_branch
          %257 = sbr.rel (%p255) target = $region16
        $region15: #{tpu_custom_call.1} parent=11 // pred_region
          %s258 = smul.u32 32, %s30
          %s260 = ssub.s32 4096, 4096
          %261 = vsyncadd [#allocation4], %s260
          %s262 = smul.addr %s258, 128
          %s263 = scalar_lea.hbm %s0, %s262
          %s264 = sshll.u32 [#allocation3], 4
          %s265 = int_to_ptr.vmem [resolvable:$true] %s264
          %270 = dma.hbm_to_vmem [thread:$0]  %s263, 4096, %s265, [#allocation4], 128, 128, 8
        $region16: #{tpu_custom_call.1} parent=11 // pred_fallthru
          _
        // Predicated region
        $region17: #{tpu_custom_call.1} parent=11 // pred_check
          %p271 = pneg %p214
        $region18: #{tpu_custom_call.1} parent=11 // pred_check_branch
          %273 = sbr.rel (%p271) target = $region20
        $region19: #{tpu_custom_call.1} parent=11 // pred_region
          _
        $region20: #{tpu_custom_call.1} parent=11 // pred_fallthru
          _
      $region12: #{tpu_custom_call.1} parent=5 // pred_fallthru
        _
      %p274 = scmp.lt.s32.totalorder %s21, 2
      // Predicated region
      $region21: #{tpu_custom_call.1} parent=5 // pred_check
        %p275 = pneg %p274
      $region22: #{tpu_custom_call.1} parent=5 // pred_check_branch
        %277 = sbr.rel (%p275) target = $region24
      $region23: #{tpu_custom_call.1} parent=5 // pred_region
        // Predicated region
        $region25: #{tpu_custom_call.1} parent=23 // pred_check
          %p278 = pneg %p79
        $region26: #{tpu_custom_call.1} parent=23 // pred_check_branch
          %280 = sbr.rel (%p278) target = $region28
        $region27: #{tpu_custom_call.1} parent=23 // pred_region
          %s281 = sand.u32 %s21, 1
          %s282 = scalar_lea.sflag [#allocation7], %s281
          %s283 = sand.u32 %s69, 1
          %s284 = smul.addr %s283, 128
          %s285 = scalar_lea.vmem [#allocation6], %s284
          %s286 = smul.u32 16, %s29
          %s288 = ssub.s32 2048, 2048
          %289 = vsyncadd %s282, %s288
          %s290 = smul.addr %s286, 128
          %s291 = scalar_lea.hbm %s1, %s290
          %s292 = sshll.u32 %s285, 4
          %s293 = int_to_ptr.vmem [resolvable:$true] %s292
          %298 = dma.hbm_to_vmem [thread:$0]  %s291, 2048, %s293, %s282, 128, 128, 8
        $region28: #{tpu_custom_call.1} parent=23 // pred_fallthru
          _
        // Predicated region
        $region29: #{tpu_custom_call.1} parent=23 // pred_check
          %p299 = pneg %p107
        $region30: #{tpu_custom_call.1} parent=23 // pred_check_branch
          %301 = sbr.rel (%p299) target = $region32
        $region31: #{tpu_custom_call.1} parent=23 // pred_region
          %s302 = sand.u32 %s21, 1
          %s303 = scalar_lea.sflag [#allocation7], %s302
          %s304 = sand.u32 %s97, 1
          %s305 = smul.addr %s304, 128
          %s306 = scalar_lea.vmem [#allocation8], %s305
          %s307 = sadd.s32 %s29, 2
          %s308 = smul.u32 16, %s307
          %s310 = ssub.s32 2048, 2048
          %311 = vsyncadd %s303, %s310
          %s312 = smul.addr %s308, 128
          %s313 = scalar_lea.hbm %s2, %s312
          %s314 = sshll.u32 %s306, 4
          %s315 = int_to_ptr.vmem [resolvable:$true] %s314
          %320 = dma.hbm_to_vmem [thread:$0]  %s313, 2048, %s315, %s303, 128, 128, 8
        $region32: #{tpu_custom_call.1} parent=23 // pred_fallthru
          _
        // Predicated region
        $region33: #{tpu_custom_call.1} parent=23 // pred_check
          %p321 = pneg %p133
        $region34: #{tpu_custom_call.1} parent=23 // pred_check_branch
          %323 = sbr.rel (%p321) target = $region36
        $region35: #{tpu_custom_call.1} parent=23 // pred_region
          %p324 = scmp.lt.s32.totalorder %s29, 3
          %s325 = scalar_select %p324, %s29, 3
          %s326 = scalar_lea.vmem %s3, %s325
        $region36: #{tpu_custom_call.1} parent=23 // pred_fallthru
          _
        // Predicated region
        $region37: #{tpu_custom_call.1} parent=23 // pred_check
          %p327 = pneg %p161
        $region38: #{tpu_custom_call.1} parent=23 // pred_check_branch
          %329 = sbr.rel (%p327) target = $region40
        $region39: #{tpu_custom_call.1} parent=23 // pred_region
          %s330 = sand.u32 %s21, 1
          %s331 = scalar_lea.sflag [#allocation10], %s330
          %s332 = sand.u32 %s151, 1
          %s333 = scalar_lea.vmem [#allocation9], %s332
          %s334 = sadd.s32 %s29, 2
          %s336 = ssub.s32 16, 16
          %337 = vsyncadd %s331, %s336
          %s338 = smul.addr %s334, 16
          %s339 = scalar_lea.hbm %s4, %s338
          %s341 = sshll.u32 %s333, 4
          %s342 = int_to_ptr.vmem [resolvable:$true] %s341
          %344 = dma.hbm_to_vmem [thread:$0]  %s339, 16, %s342, %s331
        $region40: #{tpu_custom_call.1} parent=23 // pred_fallthru
          _
        // Predicated region
        $region41: #{tpu_custom_call.1} parent=23 // pred_check
          %p345 = pneg %p187
        $region42: #{tpu_custom_call.1} parent=23 // pred_check_branch
          %347 = sbr.rel (%p345) target = $region44
        $region43: #{tpu_custom_call.1} parent=23 // pred_region
          %s348 = sand.u32 %s21, 1
          %s349 = scalar_lea.sflag [#allocation10], %s348
          %s350 = sand.u32 %s177, 1
          %s351 = smul.addr %s350, 128
          %s352 = scalar_lea.vmem [#allocation11], %s351
          %s354 = ssub.s32 2048, 2048
          %355 = vsyncadd %s349, %s354
          %s356 = smul.addr %s29, 128
          %s357 = scalar_lea.hbm %s5, %s356
          %s358 = sshll.u32 %s352, 4
          %s359 = int_to_ptr.vmem [resolvable:$true] %s358
          %364 = dma.hbm_to_vmem [thread:$0]  %s357, 2048, %s359, %s349, 256, 128, 8
        $region44: #{tpu_custom_call.1} parent=23 // pred_fallthru
          _
      $region24: #{tpu_custom_call.1} parent=5 // pred_fallthru
        _
      %p365 = scmp.le.s32.totalorder 1, %s21
      %p366 = scmp.lt.s32.totalorder %s21, 3
      %p367 = pnand %p365, %p366
      %p368 = pneg %p367
      // Predicated region
      $region45: #{tpu_custom_call.1} parent=5 // pred_check
        _
      $region46: #{tpu_custom_call.1} parent=5 // pred_check_branch
        %370 = sbr.rel (%p367) target = $region48
      $region47: #{tpu_custom_call.1} parent=5 // pred_region
        %s371 = ssub.s32 %s21, 1
        // Predicated region
        $region49: #{tpu_custom_call.1} parent=47 // pred_check
          %p372 = pneg %p59
        $region50: #{tpu_custom_call.1} parent=47 // pred_check_branch
          %374 = sbr.rel (%p372) target = $region52
        $region51: #{tpu_custom_call.1} parent=47 // pred_region
          %375 = dma.done [#allocation4], 4096
        $region52: #{tpu_custom_call.1} parent=47 // pred_fallthru
          _
        %s376 = sand.u32 %s26, 1
        %s377 = scalar_lea.sflag [#allocation7], %s376
        %s378 = sand.u32 %s72, 1
        %s379 = smul.addr %s378, 128
        %s380 = scalar_lea.vmem [#allocation6], %s379
        // Predicated region
        $region53: #{tpu_custom_call.1} parent=47 // pred_check
          %p381 = pneg %p85
        $region54: #{tpu_custom_call.1} parent=47 // pred_check_branch
          %383 = sbr.rel (%p381) target = $region56
        $region55: #{tpu_custom_call.1} parent=47 // pred_region
          %384 = dma.done %s377, 2048
        $region56: #{tpu_custom_call.1} parent=47 // pred_fallthru
          _
        %s385 = sand.u32 %s26, 1
        %s386 = scalar_lea.sflag [#allocation7], %s385
        %s387 = sand.u32 %s100, 1
        %s388 = smul.addr %s387, 128
        %s389 = scalar_lea.vmem [#allocation8], %s388
        // Predicated region
        $region57: #{tpu_custom_call.1} parent=47 // pred_check
          %p390 = pneg %p113
        $region58: #{tpu_custom_call.1} parent=47 // pred_check_branch
          %392 = sbr.rel (%p390) target = $region60
        $region59: #{tpu_custom_call.1} parent=47 // pred_region
          %393 = dma.done %s386, 2048
        $region60: #{tpu_custom_call.1} parent=47 // pred_fallthru
          _
        %s394 = sand.u32 %s26, 1
        %s395 = scalar_lea.sflag [#allocation10], %s394
        %s396 = sand.u32 %s154, 1
        %s397 = scalar_lea.vmem [#allocation9], %s396
        // Predicated region
        $region61: #{tpu_custom_call.1} parent=47 // pred_check
          %p398 = pneg %p167
        $region62: #{tpu_custom_call.1} parent=47 // pred_check_branch
          %400 = sbr.rel (%p398) target = $region64
        $region63: #{tpu_custom_call.1} parent=47 // pred_region
          %401 = dma.done %s395, 16
        $region64: #{tpu_custom_call.1} parent=47 // pred_fallthru
          _
        %s402 = sand.u32 %s26, 1
        %s403 = scalar_lea.sflag [#allocation10], %s402
        %s404 = sand.u32 %s180, 1
        %s405 = smul.addr %s404, 128
        %s406 = scalar_lea.vmem [#allocation11], %s405
        // Predicated region
        $region65: #{tpu_custom_call.1} parent=47 // pred_check
          %p407 = pneg %p193
        $region66: #{tpu_custom_call.1} parent=47 // pred_check_branch
          %409 = sbr.rel (%p407) target = $region68
        $region67: #{tpu_custom_call.1} parent=47 // pred_region
          %410 = dma.done %s403, 2048
        $region68: #{tpu_custom_call.1} parent=47 // pred_fallthru
          _
        %p411 = pneg %p59
        %p412 = pneg %p56
        %s413 = sand.u32 %s26, 1
        %s414 = scalar_lea.sflag [#allocation7], %s413
        %s415 = sand.u32 %s72, 1
        %s416 = smul.addr %s415, 128
        %s417 = scalar_lea.vmem [#allocation6], %s416
        %p418 = pneg %p85
        %p419 = pneg %p82
        %s420 = sand.u32 %s26, 1
        %s421 = scalar_lea.sflag [#allocation7], %s420
        %s422 = sand.u32 %s100, 1
        %s423 = smul.addr %s422, 128
        %s424 = scalar_lea.vmem [#allocation8], %s423
        %p425 = pneg %p113
        %p426 = pneg %p110
        %p427 = scmp.lt.s32.totalorder %s31, 3
        %s428 = scalar_select %p427, %s31, 3
        %s429 = scalar_lea.vmem %s3, %s428
        %p430 = pneg %p139
        %p431 = pneg %p136
        %s432 = sand.u32 %s26, 1
        %s433 = scalar_lea.sflag [#allocation10], %s432
        %s434 = sand.u32 %s154, 1
        %s435 = scalar_lea.vmem [#allocation9], %s434
        %p436 = pneg %p167
        %p437 = pneg %p164
        %s438 = sand.u32 %s26, 1
        %s439 = scalar_lea.sflag [#allocation10], %s438
        %s440 = sand.u32 %s180, 1
        %s441 = smul.addr %s440, 128
        %s442 = scalar_lea.vmem [#allocation11], %s441
        %p443 = pneg %p193
        %p444 = pneg %p190
        %p445 = pneg %p214
        %p446 = pneg %p211
        %p447 = pneg %p240
        %p448 = pneg %p237
        %s449 = smul.u32 32, %s30
        %s450 = smul.u32 16, %s31
        %s451 = sadd.s32 %s31, 2
        %s452 = smul.u32 16, %s451
        %p453 = scmp.lt.s32.totalorder %s31, 3
        %s454 = scalar_select %p453, %s31, 3
        %s455 = scalar_lea.vmem %s3, %s454
        %s456 = sadd.s32 %s31, 2
        %s457 = smul.u32 32, %s30
        %p458 = scmp.eq.s32.totalorder %s31, 0
        // Predicated region
        $region69: #{tpu_custom_call.1} parent=47 // pred_check
          %p459 = pneg %p458
        $region70: #{tpu_custom_call.1} parent=47 // pred_check_branch
          %461 = sbr.rel (%p459) target = $region72
        $region71: #{tpu_custom_call.1} parent=47 // pred_region
          %462 = vst [vmem:[#allocation2] sm:$0xff] 0.0
          %463 = vst [vmem:[#allocation2 + $0x8] sm:$0xff] 0.0
          %464 = vst [vmem:[#allocation2 + $0x10] sm:$0xff] 0.0
          %465 = vst [vmem:[#allocation2 + $0x18] sm:$0xff] 0.0
          %466 = vst [vmem:[#allocation2 + $0x20] sm:$0xff] 0.0
          %467 = vst [vmem:[#allocation2 + $0x28] sm:$0xff] 0.0
          %468 = vst [vmem:[#allocation2 + $0x30] sm:$0xff] 0.0
          %469 = vst [vmem:[#allocation2 + $0x38] sm:$0xff] 0.0
          %470 = vst [vmem:[#allocation2 + $0x40] sm:$0xff] 0.0
          %471 = vst [vmem:[#allocation2 + $0x48] sm:$0xff] 0.0
          %472 = vst [vmem:[#allocation2 + $0x50] sm:$0xff] 0.0
          %473 = vst [vmem:[#allocation2 + $0x58] sm:$0xff] 0.0
          %474 = vst [vmem:[#allocation2 + $0x60] sm:$0xff] 0.0
          %475 = vst [vmem:[#allocation2 + $0x68] sm:$0xff] 0.0
          %476 = vst [vmem:[#allocation2 + $0x70] sm:$0xff] 0.0
          %477 = vst [vmem:[#allocation2 + $0x78] sm:$0xff] 0.0
          %478 = vst [vmem:[#allocation2 + $0x80] sm:$0xff] 0.0
          %479 = vst [vmem:[#allocation2 + $0x88] sm:$0xff] 0.0
          %480 = vst [vmem:[#allocation2 + $0x90] sm:$0xff] 0.0
          %481 = vst [vmem:[#allocation2 + $0x98] sm:$0xff] 0.0
          %482 = vst [vmem:[#allocation2 + $0xa0] sm:$0xff] 0.0
          %483 = vst [vmem:[#allocation2 + $0xa8] sm:$0xff] 0.0
          %484 = vst [vmem:[#allocation2 + $0xb0] sm:$0xff] 0.0
          %485 = vst [vmem:[#allocation2 + $0xb8] sm:$0xff] 0.0
          %486 = vst [vmem:[#allocation2 + $0xc0] sm:$0xff] 0.0
          %487 = vst [vmem:[#allocation2 + $0xc8] sm:$0xff] 0.0
          %488 = vst [vmem:[#allocation2 + $0xd0] sm:$0xff] 0.0
          %489 = vst [vmem:[#allocation2 + $0xd8] sm:$0xff] 0.0
          %490 = vst [vmem:[#allocation2 + $0xe0] sm:$0xff] 0.0
          %491 = vst [vmem:[#allocation2 + $0xe8] sm:$0xff] 0.0
          %492 = vst [vmem:[#allocation2 + $0xf0] sm:$0xff] 0.0
          %493 = vst [vmem:[#allocation2 + $0xf8] sm:$0xff] 0.0
        $region72: #{tpu_custom_call.1} parent=47 // pred_fallthru
          _
        %v494 = vld [vmem:[#allocation3] sm:$0xff]
        %v495 = vld [vmem:[#allocation3 + $0x8] sm:$0xff]
        %v496 = vld [vmem:[#allocation3 + $0x10] sm:$0xff]
        %v497 = vld [vmem:[#allocation3 + $0x18] sm:$0xff]
        %v498 = vld [vmem:[#allocation3 + $0x20] sm:$0xff]
        %v499 = vld [vmem:[#allocation3 + $0x28] sm:$0xff]
        %v500 = vld [vmem:[#allocation3 + $0x30] sm:$0xff]
        %v501 = vld [vmem:[#allocation3 + $0x38] sm:$0xff]
        %v502 = vld [vmem:[#allocation3 + $0x40] sm:$0xff]
        %v503 = vld [vmem:[#allocation3 + $0x48] sm:$0xff]
        %v504 = vld [vmem:[#allocation3 + $0x50] sm:$0xff]
        %v505 = vld [vmem:[#allocation3 + $0x58] sm:$0xff]
        %v506 = vld [vmem:[#allocation3 + $0x60] sm:$0xff]
        %v507 = vld [vmem:[#allocation3 + $0x68] sm:$0xff]
        %v508 = vld [vmem:[#allocation3 + $0x70] sm:$0xff]
        %v509 = vld [vmem:[#allocation3 + $0x78] sm:$0xff]
        %v510 = vld [vmem:[#allocation3 + $0x80] sm:$0xff]
        %v511 = vld [vmem:[#allocation3 + $0x88] sm:$0xff]
        %v512 = vld [vmem:[#allocation3 + $0x90] sm:$0xff]
        %v513 = vld [vmem:[#allocation3 + $0x98] sm:$0xff]
        %v514 = vld [vmem:[#allocation3 + $0xa0] sm:$0xff]
        %v515 = vld [vmem:[#allocation3 + $0xa8] sm:$0xff]
        %v516 = vld [vmem:[#allocation3 + $0xb0] sm:$0xff]
        %v517 = vld [vmem:[#allocation3 + $0xb8] sm:$0xff]
        %v518 = vld [vmem:[#allocation3 + $0xc0] sm:$0xff]
        %v519 = vld [vmem:[#allocation3 + $0xc8] sm:$0xff]
        %v520 = vld [vmem:[#allocation3 + $0xd0] sm:$0xff]
        %v521 = vld [vmem:[#allocation3 + $0xd8] sm:$0xff]
        %v522 = vld [vmem:[#allocation3 + $0xe0] sm:$0xff]
        %v523 = vld [vmem:[#allocation3 + $0xe8] sm:$0xff]
        %v524 = vld [vmem:[#allocation3 + $0xf0] sm:$0xff]
        %v525 = vld [vmem:[#allocation3 + $0xf8] sm:$0xff]
        %v526 = vld [vmem:[%s380] sm:$0xff]
        %v527 = vld [vmem:[%s380 + $0x8] sm:$0xff]
        %v528 = vld [vmem:[%s380 + $0x10] sm:$0xff]
        %v529 = vld [vmem:[%s380 + $0x18] sm:$0xff]
        %v530 = vld [vmem:[%s380 + $0x20] sm:$0xff]
        %v531 = vld [vmem:[%s380 + $0x28] sm:$0xff]
        %v532 = vld [vmem:[%s380 + $0x30] sm:$0xff]
        %v533 = vld [vmem:[%s380 + $0x38] sm:$0xff]
        %v534 = vld [vmem:[%s380 + $0x40] sm:$0xff]
        %v535 = vld [vmem:[%s380 + $0x48] sm:$0xff]
        %v536 = vld [vmem:[%s380 + $0x50] sm:$0xff]
        %v537 = vld [vmem:[%s380 + $0x58] sm:$0xff]
        %v538 = vld [vmem:[%s380 + $0x60] sm:$0xff]
        %v539 = vld [vmem:[%s380 + $0x68] sm:$0xff]
        %v540 = vld [vmem:[%s380 + $0x70] sm:$0xff]
        %v541 = vld [vmem:[%s380 + $0x78] sm:$0xff]
        %v542 = vld [vmem:[%s455] sm:$0x1]
        %v544 = vlaneseq
        %v545 = vshrl.u32 %v544, 7
        %v546 = vsub.s32 0, %v545
        %v547 = vrot.slane %v542, %v546
        %549 = vmatprep.subr.mxu0 0.0
        %550 = vmatpush1.xpose.msra.mxu0 %v541
        %551 = vmatprep.subr.mxu0 0.0
        %552 = vmatpush1.xpose.msra.mxu0 %v540
        %553 = vmatprep.subr.mxu0 0.0
        %554 = vmatpush1.xpose.msra.mxu0 %v539
        %555 = vmatprep.subr.mxu0 0.0
        %556 = vmatpush1.xpose.msra.mxu0 %v538
        %557 = vmatprep.subr.mxu0 0.0
        %558 = vmatpush1.xpose.msra.mxu0 %v537
        %559 = vmatprep.subr.mxu0 0.0
        %560 = vmatpush1.xpose.msra.mxu0 %v536
        %561 = vmatprep.subr.mxu0 0.0
        %562 = vmatpush1.xpose.msra.mxu0 %v535
        %563 = vmatprep.subr.mxu0 0.0
        %564 = vmatpush1.xpose.msra.mxu0 %v534
        %565 = vmatprep.subr.mxu0 0.0
        %566 = vmatpush1.xpose.msra.mxu0 %v533
        %567 = vmatprep.subr.mxu0 0.0
        %568 = vmatpush1.xpose.msra.mxu0 %v532
        %569 = vmatprep.subr.mxu0 0.0
        %570 = vmatpush1.xpose.msra.mxu0 %v531
        %571 = vmatprep.subr.mxu0 0.0
        %572 = vmatpush1.xpose.msra.mxu0 %v530
        %573 = vmatprep.subr.mxu0 0.0
        %574 = vmatpush1.xpose.msra.mxu0 %v529
        %575 = vmatprep.subr.mxu0 0.0
        %576 = vmatpush1.xpose.msra.mxu0 %v528
        %577 = vmatprep.subr.mxu0 0.0
        %578 = vmatpush1.xpose.msra.mxu0 %v527
        %579 = vmatprep.subr.mxu0 0.0
        %580 = vmatpush1.xpose.msra.mxu0 %v526
        %581 = vmatprep.subr.mxu0 0.0
        %582 = vmatpush2.xpose.msra.mxu0 0.0
        %583 = vmatprep.subr.mxu0 0.0
        %584 = vmatpush2.xpose.msra.mxu0 0.0
        %585 = vmatprep.subr.mxu0 0.0
        %586 = vmatpush2.xpose.msra.mxu0 0.0
        %587 = vmatprep.subr.mxu0 0.0
        %588 = vmatpush2.xpose.msra.mxu0 0.0
        %589 = vmatprep.subr.mxu0 0.0
        %590 = vmatpush2.xpose.msra.mxu0 0.0
        %591 = vmatprep.subr.mxu0 0.0
        %592 = vmatpush2.xpose.msra.mxu0 0.0
        %593 = vmatprep.subr.mxu0 0.0
        %594 = vmatpush2.xpose.msra.mxu0 0.0
        %595 = vmatprep.subr.mxu0 0.0
        %596 = vmatpush2.xpose.msra.mxu0 0.0
        %597 = vmatprep.subr.mxu0 0.0
        %598 = vmatpush2.xpose.msra.mxu0 0.0
        %599 = vmatprep.subr.mxu0 0.0
        %600 = vmatpush2.xpose.msra.mxu0 0.0
        %601 = vmatprep.subr.mxu0 0.0
        %602 = vmatpush2.xpose.msra.mxu0 0.0
        %603 = vmatprep.subr.mxu0 0.0
        %604 = vmatpush2.xpose.msra.mxu0 0.0
        %605 = vmatprep.subr.mxu0 0.0
        %606 = vmatpush2.xpose.msra.mxu0 0.0
        %607 = vmatprep.subr.mxu0 0.0
        %608 = vmatpush2.xpose.msra.mxu0 0.0
        %609 = vmatprep.subr.mxu0 0.0
        %610 = vmatpush2.xpose.msra.mxu0 0.0
        %611 = vmatprep.subr.mxu0 0.0
        %612 = vmatpush2.xpose.msra.mxu0 0.0
        %613 = vmatprep.mubr.f32.mxu0 0.0
        %614 = vmatmul.mubr.f32.gmra.mxu0 %v494
        %v615 = vpop.f32.mrf.mxu0
        %v616 = vadd.f32 %v547, %v615
        %v617 = vpop.f32.mrf.mxu0
        %618 = vmatprep.mubr.f32.mxu0 0.0
        %619 = vmatmul.mubr.f32.gmra.mxu0 %v495
        %v620 = vpop.f32.mrf.mxu0
        %v621 = vadd.f32 %v547, %v620
        %v622 = vpop.f32.mrf.mxu0
        %623 = vmatprep.mubr.f32.mxu0 0.0
        %624 = vmatmul.mubr.f32.gmra.mxu0 %v496
        %v625 = vpop.f32.mrf.mxu0
        %v626 = vadd.f32 %v547, %v625
        %v627 = vpop.f32.mrf.mxu0
        %628 = vmatprep.mubr.f32.mxu0 0.0
        %629 = vmatmul.mubr.f32.gmra.mxu0 %v497
        %v630 = vpop.f32.mrf.mxu0
        %v631 = vadd.f32 %v547, %v630
        %v632 = vpop.f32.mrf.mxu0
        %633 = vmatprep.mubr.f32.mxu0 0.0
        %634 = vmatmul.mubr.f32.gmra.mxu0 %v498
        %v635 = vpop.f32.mrf.mxu0
        %v636 = vadd.f32 %v547, %v635
        %v637 = vpop.f32.mrf.mxu0
        %638 = vmatprep.mubr.f32.mxu0 0.0
        %639 = vmatmul.mubr.f32.gmra.mxu0 %v499
        %v640 = vpop.f32.mrf.mxu0
        %v641 = vadd.f32 %v547, %v640
        %v642 = vpop.f32.mrf.mxu0
        %643 = vmatprep.mubr.f32.mxu0 0.0
        %644 = vmatmul.mubr.f32.gmra.mxu0 %v500
        %v645 = vpop.f32.mrf.mxu0
        %v646 = vadd.f32 %v547, %v645
        %v647 = vpop.f32.mrf.mxu0
        %648 = vmatprep.mubr.f32.mxu0 0.0
        %649 = vmatmul.mubr.f32.gmra.mxu0 %v501
        %v650 = vpop.f32.mrf.mxu0
        %v651 = vadd.f32 %v547, %v650
        %v652 = vpop.f32.mrf.mxu0
        %653 = vmatprep.mubr.f32.mxu0 0.0
        %654 = vmatmul.mubr.f32.gmra.mxu0 %v502
        %v655 = vpop.f32.mrf.mxu0
        %v656 = vadd.f32 %v547, %v655
        %v657 = vpop.f32.mrf.mxu0
        %658 = vmatprep.mubr.f32.mxu0 0.0
        %659 = vmatmul.mubr.f32.gmra.mxu0 %v503
        %v660 = vpop.f32.mrf.mxu0
        %v661 = vadd.f32 %v547, %v660
        %v662 = vpop.f32.mrf.mxu0
        %663 = vmatprep.mubr.f32.mxu0 0.0
        %664 = vmatmul.mubr.f32.gmra.mxu0 %v504
        %v665 = vpop.f32.mrf.mxu0
        %v666 = vadd.f32 %v547, %v665
        %v667 = vpop.f32.mrf.mxu0
        %668 = vmatprep.mubr.f32.mxu0 0.0
        %669 = vmatmul.mubr.f32.gmra.mxu0 %v505
        %v670 = vpop.f32.mrf.mxu0
        %v671 = vadd.f32 %v547, %v670
        %v672 = vpop.f32.mrf.mxu0
        %673 = vmatprep.mubr.f32.mxu0 0.0
        %674 = vmatmul.mubr.f32.gmra.mxu0 %v506
        %v675 = vpop.f32.mrf.mxu0
        %v676 = vadd.f32 %v547, %v675
        %v677 = vpop.f32.mrf.mxu0
        %678 = vmatprep.mubr.f32.mxu0 0.0
        %679 = vmatmul.mubr.f32.gmra.mxu0 %v507
        %v680 = vpop.f32.mrf.mxu0
        %v681 = vadd.f32 %v547, %v680
        %v682 = vpop.f32.mrf.mxu0
        %683 = vmatprep.mubr.f32.mxu0 0.0
        %684 = vmatmul.mubr.f32.gmra.mxu0 %v508
        %v685 = vpop.f32.mrf.mxu0
        %v686 = vadd.f32 %v547, %v685
        %v687 = vpop.f32.mrf.mxu0
        %688 = vmatprep.mubr.f32.mxu0 0.0
        %689 = vmatmul.mubr.f32.gmra.mxu0 %v509
        %v690 = vpop.f32.mrf.mxu0
        %v691 = vadd.f32 %v547, %v690
        %v692 = vpop.f32.mrf.mxu0
        %693 = vmatprep.mubr.f32.mxu0 0.0
        %694 = vmatmul.mubr.f32.gmra.mxu0 %v510
        %v695 = vpop.f32.mrf.mxu0
        %v696 = vadd.f32 %v547, %v695
        %v697 = vpop.f32.mrf.mxu0
        %698 = vmatprep.mubr.f32.mxu0 0.0
        %699 = vmatmul.mubr.f32.gmra.mxu0 %v511
        %v700 = vpop.f32.mrf.mxu0
        %v701 = vadd.f32 %v547, %v700
        %v702 = vpop.f32.mrf.mxu0
        %703 = vmatprep.mubr.f32.mxu0 0.0
        %704 = vmatmul.mubr.f32.gmra.mxu0 %v512
        %v705 = vpop.f32.mrf.mxu0
        %v706 = vadd.f32 %v547, %v705
        %v707 = vpop.f32.mrf.mxu0
        %708 = vmatprep.mubr.f32.mxu0 0.0
        %709 = vmatmul.mubr.f32.gmra.mxu0 %v513
        %v710 = vpop.f32.mrf.mxu0
        %v711 = vadd.f32 %v547, %v710
        %v712 = vpop.f32.mrf.mxu0
        %713 = vmatprep.mubr.f32.mxu0 0.0
        %714 = vmatmul.mubr.f32.gmra.mxu0 %v514
        %v715 = vpop.f32.mrf.mxu0
        %v716 = vadd.f32 %v547, %v715
        %v717 = vpop.f32.mrf.mxu0
        %718 = vmatprep.mubr.f32.mxu0 0.0
        %719 = vmatmul.mubr.f32.gmra.mxu0 %v515
        %v720 = vpop.f32.mrf.mxu0
        %v721 = vadd.f32 %v547, %v720
        %v722 = vpop.f32.mrf.mxu0
        %723 = vmatprep.mubr.f32.mxu0 0.0
        %724 = vmatmul.mubr.f32.gmra.mxu0 %v516
        %v725 = vpop.f32.mrf.mxu0
        %v726 = vadd.f32 %v547, %v725
        %v727 = vpop.f32.mrf.mxu0
        %728 = vmatprep.mubr.f32.mxu0 0.0
        %729 = vmatmul.mubr.f32.gmra.mxu0 %v517
        %v730 = vpop.f32.mrf.mxu0
        %v731 = vadd.f32 %v547, %v730
        %v732 = vpop.f32.mrf.mxu0
        %733 = vmatprep.mubr.f32.mxu0 0.0
        %734 = vmatmul.mubr.f32.gmra.mxu0 %v518
        %v735 = vpop.f32.mrf.mxu0
        %v736 = vadd.f32 %v547, %v735
        %v737 = vpop.f32.mrf.mxu0
        %738 = vmatprep.mubr.f32.mxu0 0.0
        %739 = vmatmul.mubr.f32.gmra.mxu0 %v519
        %v740 = vpop.f32.mrf.mxu0
        %v741 = vadd.f32 %v547, %v740
        %v742 = vpop.f32.mrf.mxu0
        %743 = vmatprep.mubr.f32.mxu0 0.0
        %744 = vmatmul.mubr.f32.gmra.mxu0 %v520
        %v745 = vpop.f32.mrf.mxu0
        %v746 = vadd.f32 %v547, %v745
        %v747 = vpop.f32.mrf.mxu0
        %748 = vmatprep.mubr.f32.mxu0 0.0
        %749 = vmatmul.mubr.f32.gmra.mxu0 %v521
        %v750 = vpop.f32.mrf.mxu0
        %v751 = vadd.f32 %v547, %v750
        %v752 = vpop.f32.mrf.mxu0
        %753 = vmatprep.mubr.f32.mxu0 0.0
        %754 = vmatmul.mubr.f32.gmra.mxu0 %v522
        %v755 = vpop.f32.mrf.mxu0
        %v756 = vadd.f32 %v547, %v755
        %v757 = vpop.f32.mrf.mxu0
        %758 = vmatprep.mubr.f32.mxu0 0.0
        %759 = vmatmul.mubr.f32.gmra.mxu0 %v523
        %v760 = vpop.f32.mrf.mxu0
        %v761 = vadd.f32 %v547, %v760
        %v762 = vpop.f32.mrf.mxu0
        %763 = vmatprep.mubr.f32.mxu0 0.0
        %764 = vmatmul.mubr.f32.gmra.mxu0 %v524
        %v765 = vpop.f32.mrf.mxu0
        %v766 = vadd.f32 %v547, %v765
        %v767 = vpop.f32.mrf.mxu0
        %768 = vmatprep.mubr.f32.mxu0 0.0
        %769 = vmatmul.mubr.f32.gmra.mxu0 %v525
        %v770 = vpop.f32.mrf.mxu0
        %v771 = vadd.f32 %v547, %v770
        %v772 = vpop.f32.mrf.mxu0
        %773 = vdwg.mxu0
        %v774 = vld [vmem:[%s389] sm:$0xff]
        %v775 = vld [vmem:[%s389 + $0x8] sm:$0xff]
        %v776 = vld [vmem:[%s389 + $0x10] sm:$0xff]
        %v777 = vld [vmem:[%s389 + $0x18] sm:$0xff]
        %v778 = vld [vmem:[%s389 + $0x20] sm:$0xff]
        %v779 = vld [vmem:[%s389 + $0x28] sm:$0xff]
        %v780 = vld [vmem:[%s389 + $0x30] sm:$0xff]
        %v781 = vld [vmem:[%s389 + $0x38] sm:$0xff]
        %v782 = vld [vmem:[%s389 + $0x40] sm:$0xff]
        %v783 = vld [vmem:[%s389 + $0x48] sm:$0xff]
        %v784 = vld [vmem:[%s389 + $0x50] sm:$0xff]
        %v785 = vld [vmem:[%s389 + $0x58] sm:$0xff]
        %v786 = vld [vmem:[%s389 + $0x60] sm:$0xff]
        %v787 = vld [vmem:[%s389 + $0x68] sm:$0xff]
        %v788 = vld [vmem:[%s389 + $0x70] sm:$0xff]
        %v789 = vld [vmem:[%s389 + $0x78] sm:$0xff]
        %v790 = vld [vmem:[%s397] sm:$0x1]
        %v792 = vlaneseq
        %v793 = vshrl.u32 %v792, 7
        %v794 = vsub.s32 0, %v793
        %v795 = vrot.slane %v790, %v794
        %797 = vmatprep.subr.mxu0 0.0
        %798 = vmatpush1.xpose.msra.mxu0 %v789
        %799 = vmatprep.subr.mxu0 0.0
        %800 = vmatpush1.xpose.msra.mxu0 %v788
        %801 = vmatprep.subr.mxu0 0.0
        %802 = vmatpush1.xpose.msra.mxu0 %v787
        %803 = vmatprep.subr.mxu0 0.0
        %804 = vmatpush1.xpose.msra.mxu0 %v786
        %805 = vmatprep.subr.mxu0 0.0
        %806 = vmatpush1.xpose.msra.mxu0 %v785
        %807 = vmatprep.subr.mxu0 0.0
        %808 = vmatpush1.xpose.msra.mxu0 %v784
        %809 = vmatprep.subr.mxu0 0.0
        %810 = vmatpush1.xpose.msra.mxu0 %v783
        %811 = vmatprep.subr.mxu0 0.0
        %812 = vmatpush1.xpose.msra.mxu0 %v782
        %813 = vmatprep.subr.mxu0 0.0
        %814 = vmatpush1.xpose.msra.mxu0 %v781
        %815 = vmatprep.subr.mxu0 0.0
        %816 = vmatpush1.xpose.msra.mxu0 %v780
        %817 = vmatprep.subr.mxu0 0.0
        %818 = vmatpush1.xpose.msra.mxu0 %v779
        %819 = vmatprep.subr.mxu0 0.0
        %820 = vmatpush1.xpose.msra.mxu0 %v778
        %821 = vmatprep.subr.mxu0 0.0
        %822 = vmatpush1.xpose.msra.mxu0 %v777
        %823 = vmatprep.subr.mxu0 0.0
        %824 = vmatpush1.xpose.msra.mxu0 %v776
        %825 = vmatprep.subr.mxu0 0.0
        %826 = vmatpush1.xpose.msra.mxu0 %v775
        %827 = vmatprep.subr.mxu0 0.0
        %828 = vmatpush1.xpose.msra.mxu0 %v774
        %829 = vmatprep.subr.mxu0 0.0
        %830 = vmatpush2.xpose.msra.mxu0 0.0
        %831 = vmatprep.subr.mxu0 0.0
        %832 = vmatpush2.xpose.msra.mxu0 0.0
        %833 = vmatprep.subr.mxu0 0.0
        %834 = vmatpush2.xpose.msra.mxu0 0.0
        %835 = vmatprep.subr.mxu0 0.0
        %836 = vmatpush2.xpose.msra.mxu0 0.0
        %837 = vmatprep.subr.mxu0 0.0
        %838 = vmatpush2.xpose.msra.mxu0 0.0
        %839 = vmatprep.subr.mxu0 0.0
        %840 = vmatpush2.xpose.msra.mxu0 0.0
        %841 = vmatprep.subr.mxu0 0.0
        %842 = vmatpush2.xpose.msra.mxu0 0.0
        %843 = vmatprep.subr.mxu0 0.0
        %844 = vmatpush2.xpose.msra.mxu0 0.0
        %845 = vmatprep.subr.mxu0 0.0
        %846 = vmatpush2.xpose.msra.mxu0 0.0
        %847 = vmatprep.subr.mxu0 0.0
        %848 = vmatpush2.xpose.msra.mxu0 0.0
        %849 = vmatprep.subr.mxu0 0.0
        %850 = vmatpush2.xpose.msra.mxu0 0.0
        %851 = vmatprep.subr.mxu0 0.0
        %852 = vmatpush2.xpose.msra.mxu0 0.0
        %853 = vmatprep.subr.mxu0 0.0
        %854 = vmatpush2.xpose.msra.mxu0 0.0
        %855 = vmatprep.subr.mxu0 0.0
        %856 = vmatpush2.xpose.msra.mxu0 0.0
        %857 = vmatprep.subr.mxu0 0.0
        %858 = vmatpush2.xpose.msra.mxu0 0.0
        %859 = vmatprep.subr.mxu0 0.0
        %860 = vmatpush2.xpose.msra.mxu0 0.0
        %861 = vmatprep.mubr.f32.mxu0 0.0
        %862 = vmatmul.mubr.f32.gmra.mxu0 %v494
        %v863 = vpop.f32.mrf.mxu0
        %v864 = vadd.f32 %v795, %v863
        %v865 = vpop.f32.mrf.mxu0
        %866 = vmatprep.mubr.f32.mxu0 0.0
        %867 = vmatmul.mubr.f32.gmra.mxu0 %v495
        %v868 = vpop.f32.mrf.mxu0
        %v869 = vadd.f32 %v795, %v868
        %v870 = vpop.f32.mrf.mxu0
        %871 = vmatprep.mubr.f32.mxu0 0.0
        %872 = vmatmul.mubr.f32.gmra.mxu0 %v496
        %v873 = vpop.f32.mrf.mxu0
        %v874 = vadd.f32 %v795, %v873
        %v875 = vpop.f32.mrf.mxu0
        %876 = vmatprep.mubr.f32.mxu0 0.0
        %877 = vmatmul.mubr.f32.gmra.mxu0 %v497
        %v878 = vpop.f32.mrf.mxu0
        %v879 = vadd.f32 %v795, %v878
        %v880 = vpop.f32.mrf.mxu0
        %881 = vmatprep.mubr.f32.mxu0 0.0
        %882 = vmatmul.mubr.f32.gmra.mxu0 %v498
        %v883 = vpop.f32.mrf.mxu0
        %v884 = vadd.f32 %v795, %v883
        %v885 = vpop.f32.mrf.mxu0
        %886 = vmatprep.mubr.f32.mxu0 0.0
        %887 = vmatmul.mubr.f32.gmra.mxu0 %v499
        %v888 = vpop.f32.mrf.mxu0
        %v889 = vadd.f32 %v795, %v888
        %v890 = vpop.f32.mrf.mxu0
        %891 = vmatprep.mubr.f32.mxu0 0.0
        %892 = vmatmul.mubr.f32.gmra.mxu0 %v500
        %v893 = vpop.f32.mrf.mxu0
        %v894 = vadd.f32 %v795, %v893
        %v895 = vpop.f32.mrf.mxu0
        %896 = vmatprep.mubr.f32.mxu0 0.0
        %897 = vmatmul.mubr.f32.gmra.mxu0 %v501
        %v898 = vpop.f32.mrf.mxu0
        %v899 = vadd.f32 %v795, %v898
        %v900 = vpop.f32.mrf.mxu0
        %901 = vmatprep.mubr.f32.mxu0 0.0
        %902 = vmatmul.mubr.f32.gmra.mxu0 %v502
        %v903 = vpop.f32.mrf.mxu0
        %v904 = vadd.f32 %v795, %v903
        %v905 = vpop.f32.mrf.mxu0
        %906 = vmatprep.mubr.f32.mxu0 0.0
        %907 = vmatmul.mubr.f32.gmra.mxu0 %v503
        %v908 = vpop.f32.mrf.mxu0
        %v909 = vadd.f32 %v795, %v908
        %v910 = vpop.f32.mrf.mxu0
        %911 = vmatprep.mubr.f32.mxu0 0.0
        %912 = vmatmul.mubr.f32.gmra.mxu0 %v504
        %v913 = vpop.f32.mrf.mxu0
        %v914 = vadd.f32 %v795, %v913
        %v915 = vpop.f32.mrf.mxu0
        %916 = vmatprep.mubr.f32.mxu0 0.0
        %917 = vmatmul.mubr.f32.gmra.mxu0 %v505
        %v918 = vpop.f32.mrf.mxu0
        %v919 = vadd.f32 %v795, %v918
        %v920 = vpop.f32.mrf.mxu0
        %921 = vmatprep.mubr.f32.mxu0 0.0
        %922 = vmatmul.mubr.f32.gmra.mxu0 %v506
        %v923 = vpop.f32.mrf.mxu0
        %v924 = vadd.f32 %v795, %v923
        %v925 = vpop.f32.mrf.mxu0
        %926 = vmatprep.mubr.f32.mxu0 0.0
        %927 = vmatmul.mubr.f32.gmra.mxu0 %v507
        %v928 = vpop.f32.mrf.mxu0
        %v929 = vadd.f32 %v795, %v928
        %v930 = vpop.f32.mrf.mxu0
        %931 = vmatprep.mubr.f32.mxu0 0.0
        %932 = vmatmul.mubr.f32.gmra.mxu0 %v508
        %v933 = vpop.f32.mrf.mxu0
        %v934 = vadd.f32 %v795, %v933
        %v935 = vpop.f32.mrf.mxu0
        %936 = vmatprep.mubr.f32.mxu0 0.0
        %937 = vmatmul.mubr.f32.gmra.mxu0 %v509
        %v938 = vpop.f32.mrf.mxu0
        %v939 = vadd.f32 %v795, %v938
        %v940 = vpop.f32.mrf.mxu0
        %941 = vmatprep.mubr.f32.mxu0 0.0
        %942 = vmatmul.mubr.f32.gmra.mxu0 %v510
        %v943 = vpop.f32.mrf.mxu0
        %v944 = vadd.f32 %v795, %v943
        %v945 = vpop.f32.mrf.mxu0
        %946 = vmatprep.mubr.f32.mxu0 0.0
        %947 = vmatmul.mubr.f32.gmra.mxu0 %v511
        %v948 = vpop.f32.mrf.mxu0
        %v949 = vadd.f32 %v795, %v948
        %v950 = vpop.f32.mrf.mxu0
        %951 = vmatprep.mubr.f32.mxu0 0.0
        %952 = vmatmul.mubr.f32.gmra.mxu0 %v512
        %v953 = vpop.f32.mrf.mxu0
        %v954 = vadd.f32 %v795, %v953
        %v955 = vpop.f32.mrf.mxu0
        %956 = vmatprep.mubr.f32.mxu0 0.0
        %957 = vmatmul.mubr.f32.gmra.mxu0 %v513
        %v958 = vpop.f32.mrf.mxu0
        %v959 = vadd.f32 %v795, %v958
        %v960 = vpop.f32.mrf.mxu0
        %961 = vmatprep.mubr.f32.mxu0 0.0
        %962 = vmatmul.mubr.f32.gmra.mxu0 %v514
        %v963 = vpop.f32.mrf.mxu0
        %v964 = vadd.f32 %v795, %v963
        %v965 = vpop.f32.mrf.mxu0
        %966 = vmatprep.mubr.f32.mxu0 0.0
        %967 = vmatmul.mubr.f32.gmra.mxu0 %v515
        %v968 = vpop.f32.mrf.mxu0
        %v969 = vadd.f32 %v795, %v968
        %v970 = vpop.f32.mrf.mxu0
        %971 = vmatprep.mubr.f32.mxu0 0.0
        %972 = vmatmul.mubr.f32.gmra.mxu0 %v516
        %v973 = vpop.f32.mrf.mxu0
        %v974 = vadd.f32 %v795, %v973
        %v975 = vpop.f32.mrf.mxu0
        %976 = vmatprep.mubr.f32.mxu0 0.0
        %977 = vmatmul.mubr.f32.gmra.mxu0 %v517
        %v978 = vpop.f32.mrf.mxu0
        %v979 = vadd.f32 %v795, %v978
        %v980 = vpop.f32.mrf.mxu0
        %981 = vmatprep.mubr.f32.mxu0 0.0
        %982 = vmatmul.mubr.f32.gmra.mxu0 %v518
        %v983 = vpop.f32.mrf.mxu0
        %v984 = vadd.f32 %v795, %v983
        %v985 = vpop.f32.mrf.mxu0
        %986 = vmatprep.mubr.f32.mxu0 0.0
        %987 = vmatmul.mubr.f32.gmra.mxu0 %v519
        %v988 = vpop.f32.mrf.mxu0
        %v989 = vadd.f32 %v795, %v988
        %v990 = vpop.f32.mrf.mxu0
        %991 = vmatprep.mubr.f32.mxu0 0.0
        %992 = vmatmul.mubr.f32.gmra.mxu0 %v520
        %v993 = vpop.f32.mrf.mxu0
        %v994 = vadd.f32 %v795, %v993
        %v995 = vpop.f32.mrf.mxu0
        %996 = vmatprep.mubr.f32.mxu0 0.0
        %997 = vmatmul.mubr.f32.gmra.mxu0 %v521
        %v998 = vpop.f32.mrf.mxu0
        %v999 = vadd.f32 %v795, %v998
        %v1000 = vpop.f32.mrf.mxu0
        %1001 = vmatprep.mubr.f32.mxu0 0.0
        %1002 = vmatmul.mubr.f32.gmra.mxu0 %v522
        %v1003 = vpop.f32.mrf.mxu0
        %v1004 = vadd.f32 %v795, %v1003
        %v1005 = vpop.f32.mrf.mxu0
        %1006 = vmatprep.mubr.f32.mxu0 0.0
        %1007 = vmatmul.mubr.f32.gmra.mxu0 %v523
        %v1008 = vpop.f32.mrf.mxu0
        %v1009 = vadd.f32 %v795, %v1008
        %v1010 = vpop.f32.mrf.mxu0
        %1011 = vmatprep.mubr.f32.mxu0 0.0
        %1012 = vmatmul.mubr.f32.gmra.mxu0 %v524
        %v1013 = vpop.f32.mrf.mxu0
        %v1014 = vadd.f32 %v795, %v1013
        %v1015 = vpop.f32.mrf.mxu0
        %1016 = vmatprep.mubr.f32.mxu0 0.0
        %1017 = vmatmul.mubr.f32.gmra.mxu0 %v525
        %v1018 = vpop.f32.mrf.mxu0
        %v1019 = vadd.f32 %v795, %v1018
        %v1020 = vpop.f32.mrf.mxu0
        %1021 = vdwg.mxu0
        %v1022 = vxor.u32 %v616, 2147483648
        %v1023 = vxor.u32 %v621, 2147483648
        %v1024 = vxor.u32 %v626, 2147483648
        %v1025 = vxor.u32 %v631, 2147483648
        %v1026 = vxor.u32 %v636, 2147483648
        %v1027 = vxor.u32 %v641, 2147483648
        %v1028 = vxor.u32 %v646, 2147483648
        %v1029 = vxor.u32 %v651, 2147483648
        %v1030 = vxor.u32 %v656, 2147483648
        %v1031 = vxor.u32 %v661, 2147483648
        %v1032 = vxor.u32 %v666, 2147483648
        %v1033 = vxor.u32 %v671, 2147483648
        %v1034 = vxor.u32 %v676, 2147483648
        %v1035 = vxor.u32 %v681, 2147483648
        %v1036 = vxor.u32 %v686, 2147483648
        %v1037 = vxor.u32 %v691, 2147483648
        %v1038 = vxor.u32 %v696, 2147483648
        %v1039 = vxor.u32 %v701, 2147483648
        %v1040 = vxor.u32 %v706, 2147483648
        %v1041 = vxor.u32 %v711, 2147483648
        %v1042 = vxor.u32 %v716, 2147483648
        %v1043 = vxor.u32 %v721, 2147483648
        %v1044 = vxor.u32 %v726, 2147483648
        %v1045 = vxor.u32 %v731, 2147483648
        %v1046 = vxor.u32 %v736, 2147483648
        %v1047 = vxor.u32 %v741, 2147483648
        %v1048 = vxor.u32 %v746, 2147483648
        %v1049 = vxor.u32 %v751, 2147483648
        %v1050 = vxor.u32 %v756, 2147483648
        %v1051 = vxor.u32 %v761, 2147483648
        %v1052 = vxor.u32 %v766, 2147483648
        %v1053 = vxor.u32 %v771, 2147483648
        %v1054 = vmul.f32 %v1022, 1.442695
        %v1055 = vpow.pop %v1054
        %v1056 = vmul.f32 %v1023, 1.442695
        %v1057 = vpow.pop %v1056
        %v1058 = vmul.f32 %v1024, 1.442695
        %v1059 = vpow.pop %v1058
        %v1060 = vmul.f32 %v1025, 1.442695
        %v1061 = vpow.pop %v1060
        %v1062 = vmul.f32 %v1026, 1.442695
        %v1063 = vpow.pop %v1062
        %v1064 = vmul.f32 %v1027, 1.442695
        %v1065 = vpow.pop %v1064
        %v1066 = vmul.f32 %v1028, 1.442695
        %v1067 = vpow.pop %v1066
        %v1068 = vmul.f32 %v1029, 1.442695
        %v1069 = vpow.pop %v1068
        %v1070 = vmul.f32 %v1030, 1.442695
        %v1071 = vpow.pop %v1070
        %v1072 = vmul.f32 %v1031, 1.442695
        %v1073 = vpow.pop %v1072
        %v1074 = vmul.f32 %v1032, 1.442695
        %v1075 = vpow.pop %v1074
        %v1076 = vmul.f32 %v1033, 1.442695
        %v1077 = vpow.pop %v1076
        %v1078 = vmul.f32 %v1034, 1.442695
        %v1079 = vpow.pop %v1078
        %v1080 = vmul.f32 %v1035, 1.442695
        %v1081 = vpow.pop %v1080
        %v1082 = vmul.f32 %v1036, 1.442695
        %v1083 = vpow.pop %v1082
        %v1084 = vmul.f32 %v1037, 1.442695
        %v1085 = vpow.pop %v1084
        %v1086 = vmul.f32 %v1038, 1.442695
        %v1087 = vpow.pop %v1086
        %v1088 = vmul.f32 %v1039, 1.442695
        %v1089 = vpow.pop %v1088
        %v1090 = vmul.f32 %v1040, 1.442695
        %v1091 = vpow.pop %v1090
        %v1092 = vmul.f32 %v1041, 1.442695
        %v1093 = vpow.pop %v1092
        %v1094 = vmul.f32 %v1042, 1.442695
        %v1095 = vpow.pop %v1094
        %v1096 = vmul.f32 %v1043, 1.442695
        %v1097 = vpow.pop %v1096
        %v1098 = vmul.f32 %v1044, 1.442695
        %v1099 = vpow.pop %v1098
        %v1100 = vmul.f32 %v1045, 1.442695
        %v1101 = vpow.pop %v1100
        %v1102 = vmul.f32 %v1046, 1.442695
        %v1103 = vpow.pop %v1102
        %v1104 = vmul.f32 %v1047, 1.442695
        %v1105 = vpow.pop %v1104
        %v1106 = vmul.f32 %v1048, 1.442695
        %v1107 = vpow.pop %v1106
        %v1108 = vmul.f32 %v1049, 1.442695
        %v1109 = vpow.pop %v1108
        %v1110 = vmul.f32 %v1050, 1.442695
        %v1111 = vpow.pop %v1110
        %v1112 = vmul.f32 %v1051, 1.442695
        %v1113 = vpow.pop %v1112
        %v1114 = vmul.f32 %v1052, 1.442695
        %v1115 = vpow.pop %v1114
        %v1116 = vmul.f32 %v1053, 1.442695
        %v1117 = vpow.pop %v1116
        %v1118 = vadd.f32 %v1055, 1.0
        %v1119 = vadd.f32 %v1057, 1.0
        %v1120 = vadd.f32 %v1059, 1.0
        %v1121 = vadd.f32 %v1061, 1.0
        %v1122 = vadd.f32 %v1063, 1.0
        %v1123 = vadd.f32 %v1065, 1.0
        %v1124 = vadd.f32 %v1067, 1.0
        %v1125 = vadd.f32 %v1069, 1.0
        %v1126 = vadd.f32 %v1071, 1.0
        %v1127 = vadd.f32 %v1073, 1.0
        %v1128 = vadd.f32 %v1075, 1.0
        %v1129 = vadd.f32 %v1077, 1.0
        %v1130 = vadd.f32 %v1079, 1.0
        %v1131 = vadd.f32 %v1081, 1.0
        %v1132 = vadd.f32 %v1083, 1.0
        %v1133 = vadd.f32 %v1085, 1.0
        %v1134 = vadd.f32 %v1087, 1.0
        %v1135 = vadd.f32 %v1089, 1.0
        %v1136 = vadd.f32 %v1091, 1.0
        %v1137 = vadd.f32 %v1093, 1.0
        %v1138 = vadd.f32 %v1095, 1.0
        %v1139 = vadd.f32 %v1097, 1.0
        %v1140 = vadd.f32 %v1099, 1.0
        %v1141 = vadd.f32 %v1101, 1.0
        %v1142 = vadd.f32 %v1103, 1.0
        %v1143 = vadd.f32 %v1105, 1.0
        %v1144 = vadd.f32 %v1107, 1.0
        %v1145 = vadd.f32 %v1109, 1.0
        %v1146 = vadd.f32 %v1111, 1.0
        %v1147 = vadd.f32 %v1113, 1.0
        %v1148 = vadd.f32 %v1115, 1.0
        %v1149 = vadd.f32 %v1117, 1.0
        %v1150 = vrcp.pop %v1118
        %v1151 = vmul.f32 1.0, %v1150
        %v1152 = vrcp.pop %v1119
        %v1153 = vmul.f32 1.0, %v1152
        %v1154 = vrcp.pop %v1120
        %v1155 = vmul.f32 1.0, %v1154
        %v1156 = vrcp.pop %v1121
        %v1157 = vmul.f32 1.0, %v1156
        %v1158 = vrcp.pop %v1122
        %v1159 = vmul.f32 1.0, %v1158
        %v1160 = vrcp.pop %v1123
        %v1161 = vmul.f32 1.0, %v1160
        %v1162 = vrcp.pop %v1124
        %v1163 = vmul.f32 1.0, %v1162
        %v1164 = vrcp.pop %v1125
        %v1165 = vmul.f32 1.0, %v1164
        %v1166 = vrcp.pop %v1126
        %v1167 = vmul.f32 1.0, %v1166
        %v1168 = vrcp.pop %v1127
        %v1169 = vmul.f32 1.0, %v1168
        %v1170 = vrcp.pop %v1128
        %v1171 = vmul.f32 1.0, %v1170
        %v1172 = vrcp.pop %v1129
        %v1173 = vmul.f32 1.0, %v1172
        %v1174 = vrcp.pop %v1130
        %v1175 = vmul.f32 1.0, %v1174
        %v1176 = vrcp.pop %v1131
        %v1177 = vmul.f32 1.0, %v1176
        %v1178 = vrcp.pop %v1132
        %v1179 = vmul.f32 1.0, %v1178
        %v1180 = vrcp.pop %v1133
        %v1181 = vmul.f32 1.0, %v1180
        %v1182 = vrcp.pop %v1134
        %v1183 = vmul.f32 1.0, %v1182
        %v1184 = vrcp.pop %v1135
        %v1185 = vmul.f32 1.0, %v1184
        %v1186 = vrcp.pop %v1136
        %v1187 = vmul.f32 1.0, %v1186
        %v1188 = vrcp.pop %v1137
        %v1189 = vmul.f32 1.0, %v1188
        %v1190 = vrcp.pop %v1138
        %v1191 = vmul.f32 1.0, %v1190
        %v1192 = vrcp.pop %v1139
        %v1193 = vmul.f32 1.0, %v1192
        %v1194 = vrcp.pop %v1140
        %v1195 = vmul.f32 1.0, %v1194
        %v1196 = vrcp.pop %v1141
        %v1197 = vmul.f32 1.0, %v1196
        %v1198 = vrcp.pop %v1142
        %v1199 = vmul.f32 1.0, %v1198
        %v1200 = vrcp.pop %v1143
        %v1201 = vmul.f32 1.0, %v1200
        %v1202 = vrcp.pop %v1144
        %v1203 = vmul.f32 1.0, %v1202
        %v1204 = vrcp.pop %v1145
        %v1205 = vmul.f32 1.0, %v1204
        %v1206 = vrcp.pop %v1146
        %v1207 = vmul.f32 1.0, %v1206
        %v1208 = vrcp.pop %v1147
        %v1209 = vmul.f32 1.0, %v1208
        %v1210 = vrcp.pop %v1148
        %v1211 = vmul.f32 1.0, %v1210
        %v1212 = vrcp.pop %v1149
        %v1213 = vmul.f32 1.0, %v1212
        %v1214 = vmul.f32 %v616, %v1151
        %v1215 = vmul.f32 %v621, %v1153
        %v1216 = vmul.f32 %v626, %v1155
        %v1217 = vmul.f32 %v631, %v1157
        %v1218 = vmul.f32 %v636, %v1159
        %v1219 = vmul.f32 %v641, %v1161
        %v1220 = vmul.f32 %v646, %v1163
        %v1221 = vmul.f32 %v651, %v1165
        %v1222 = vmul.f32 %v656, %v1167
        %v1223 = vmul.f32 %v661, %v1169
        %v1224 = vmul.f32 %v666, %v1171
        %v1225 = vmul.f32 %v671, %v1173
        %v1226 = vmul.f32 %v676, %v1175
        %v1227 = vmul.f32 %v681, %v1177
        %v1228 = vmul.f32 %v686, %v1179
        %v1229 = vmul.f32 %v691, %v1181
        %v1230 = vmul.f32 %v696, %v1183
        %v1231 = vmul.f32 %v701, %v1185
        %v1232 = vmul.f32 %v706, %v1187
        %v1233 = vmul.f32 %v711, %v1189
        %v1234 = vmul.f32 %v716, %v1191
        %v1235 = vmul.f32 %v721, %v1193
        %v1236 = vmul.f32 %v726, %v1195
        %v1237 = vmul.f32 %v731, %v1197
        %v1238 = vmul.f32 %v736, %v1199
        %v1239 = vmul.f32 %v741, %v1201
        %v1240 = vmul.f32 %v746, %v1203
        %v1241 = vmul.f32 %v751, %v1205
        %v1242 = vmul.f32 %v756, %v1207
        %v1243 = vmul.f32 %v761, %v1209
        %v1244 = vmul.f32 %v766, %v1211
        %v1245 = vmul.f32 %v771, %v1213
        %v1246 = vmul.f32 %v1214, %v864
        %v1247 = vmul.f32 %v1215, %v869
        %v1248 = vmul.f32 %v1216, %v874
        %v1249 = vmul.f32 %v1217, %v879
        %v1250 = vmul.f32 %v1218, %v884
        %v1251 = vmul.f32 %v1219, %v889
        %v1252 = vmul.f32 %v1220, %v894
        %v1253 = vmul.f32 %v1221, %v899
        %v1254 = vmul.f32 %v1222, %v904
        %v1255 = vmul.f32 %v1223, %v909
        %v1256 = vmul.f32 %v1224, %v914
        %v1257 = vmul.f32 %v1225, %v919
        %v1258 = vmul.f32 %v1226, %v924
        %v1259 = vmul.f32 %v1227, %v929
        %v1260 = vmul.f32 %v1228, %v934
        %v1261 = vmul.f32 %v1229, %v939
        %v1262 = vmul.f32 %v1230, %v944
        %v1263 = vmul.f32 %v1231, %v949
        %v1264 = vmul.f32 %v1232, %v954
        %v1265 = vmul.f32 %v1233, %v959
        %v1266 = vmul.f32 %v1234, %v964
        %v1267 = vmul.f32 %v1235, %v969
        %v1268 = vmul.f32 %v1236, %v974
        %v1269 = vmul.f32 %v1237, %v979
        %v1270 = vmul.f32 %v1238, %v984
        %v1271 = vmul.f32 %v1239, %v989
        %v1272 = vmul.f32 %v1240, %v994
        %v1273 = vmul.f32 %v1241, %v999
        %v1274 = vmul.f32 %v1242, %v1004
        %v1275 = vmul.f32 %v1243, %v1009
        %v1276 = vmul.f32 %v1244, %v1014
        %v1277 = vmul.f32 %v1245, %v1019
        %v1278 = vld [vmem:[#allocation2] sm:$0xff]
        %v1279 = vld [vmem:[#allocation2 + $0x8] sm:$0xff]
        %v1280 = vld [vmem:[#allocation2 + $0x10] sm:$0xff]
        %v1281 = vld [vmem:[#allocation2 + $0x18] sm:$0xff]
        %v1282 = vld [vmem:[#allocation2 + $0x20] sm:$0xff]
        %v1283 = vld [vmem:[#allocation2 + $0x28] sm:$0xff]
        %v1284 = vld [vmem:[#allocation2 + $0x30] sm:$0xff]
        %v1285 = vld [vmem:[#allocation2 + $0x38] sm:$0xff]
        %v1286 = vld [vmem:[#allocation2 + $0x40] sm:$0xff]
        %v1287 = vld [vmem:[#allocation2 + $0x48] sm:$0xff]
        %v1288 = vld [vmem:[#allocation2 + $0x50] sm:$0xff]
        %v1289 = vld [vmem:[#allocation2 + $0x58] sm:$0xff]
        %v1290 = vld [vmem:[#allocation2 + $0x60] sm:$0xff]
        %v1291 = vld [vmem:[#allocation2 + $0x68] sm:$0xff]
        %v1292 = vld [vmem:[#allocation2 + $0x70] sm:$0xff]
        %v1293 = vld [vmem:[#allocation2 + $0x78] sm:$0xff]
        %v1294 = vld [vmem:[#allocation2 + $0x80] sm:$0xff]
        %v1295 = vld [vmem:[#allocation2 + $0x88] sm:$0xff]
        %v1296 = vld [vmem:[#allocation2 + $0x90] sm:$0xff]
        %v1297 = vld [vmem:[#allocation2 + $0x98] sm:$0xff]
        %v1298 = vld [vmem:[#allocation2 + $0xa0] sm:$0xff]
        %v1299 = vld [vmem:[#allocation2 + $0xa8] sm:$0xff]
        %v1300 = vld [vmem:[#allocation2 + $0xb0] sm:$0xff]
        %v1301 = vld [vmem:[#allocation2 + $0xb8] sm:$0xff]
        %v1302 = vld [vmem:[#allocation2 + $0xc0] sm:$0xff]
        %v1303 = vld [vmem:[#allocation2 + $0xc8] sm:$0xff]
        %v1304 = vld [vmem:[#allocation2 + $0xd0] sm:$0xff]
        %v1305 = vld [vmem:[#allocation2 + $0xd8] sm:$0xff]
        %v1306 = vld [vmem:[#allocation2 + $0xe0] sm:$0xff]
        %v1307 = vld [vmem:[#allocation2 + $0xe8] sm:$0xff]
        %v1308 = vld [vmem:[#allocation2 + $0xf0] sm:$0xff]
        %v1309 = vld [vmem:[#allocation2 + $0xf8] sm:$0xff]
        %v1310 = vld [vmem:[%s406] sm:$0xff]
        %v1311 = vld [vmem:[%s406 + $0x8] sm:$0xff]
        %v1312 = vld [vmem:[%s406 + $0x10] sm:$0xff]
        %v1313 = vld [vmem:[%s406 + $0x18] sm:$0xff]
        %v1314 = vld [vmem:[%s406 + $0x20] sm:$0xff]
        %v1315 = vld [vmem:[%s406 + $0x28] sm:$0xff]
        %v1316 = vld [vmem:[%s406 + $0x30] sm:$0xff]
        %v1317 = vld [vmem:[%s406 + $0x38] sm:$0xff]
        %v1318 = vld [vmem:[%s406 + $0x40] sm:$0xff]
        %v1319 = vld [vmem:[%s406 + $0x48] sm:$0xff]
        %v1320 = vld [vmem:[%s406 + $0x50] sm:$0xff]
        %v1321 = vld [vmem:[%s406 + $0x58] sm:$0xff]
        %v1322 = vld [vmem:[%s406 + $0x60] sm:$0xff]
        %v1323 = vld [vmem:[%s406 + $0x68] sm:$0xff]
        %v1324 = vld [vmem:[%s406 + $0x70] sm:$0xff]
        %v1325 = vld [vmem:[%s406 + $0x78] sm:$0xff]
        %1326 = vmatprep.subr.mxu0 0.0
        %1327 = vmatpush1.xpose.msra.mxu0 %v1325
        %1328 = vmatprep.subr.mxu0 0.0
        %1329 = vmatpush1.xpose.msra.mxu0 %v1324
        %1330 = vmatprep.subr.mxu0 0.0
        %1331 = vmatpush1.xpose.msra.mxu0 %v1323
        %1332 = vmatprep.subr.mxu0 0.0
        %1333 = vmatpush1.xpose.msra.mxu0 %v1322
        %1334 = vmatprep.subr.mxu0 0.0
        %1335 = vmatpush1.xpose.msra.mxu0 %v1321
        %1336 = vmatprep.subr.mxu0 0.0
        %1337 = vmatpush1.xpose.msra.mxu0 %v1320
        %1338 = vmatprep.subr.mxu0 0.0
        %1339 = vmatpush1.xpose.msra.mxu0 %v1319
        %1340 = vmatprep.subr.mxu0 0.0
        %1341 = vmatpush1.xpose.msra.mxu0 %v1318
        %1342 = vmatprep.subr.mxu0 0.0
        %1343 = vmatpush1.xpose.msra.mxu0 %v1317
        %1344 = vmatprep.subr.mxu0 0.0
        %1345 = vmatpush1.xpose.msra.mxu0 %v1316
        %1346 = vmatprep.subr.mxu0 0.0
        %1347 = vmatpush1.xpose.msra.mxu0 %v1315
        %1348 = vmatprep.subr.mxu0 0.0
        %1349 = vmatpush1.xpose.msra.mxu0 %v1314
        %1350 = vmatprep.subr.mxu0 0.0
        %1351 = vmatpush1.xpose.msra.mxu0 %v1313
        %1352 = vmatprep.subr.mxu0 0.0
        %1353 = vmatpush1.xpose.msra.mxu0 %v1312
        %1354 = vmatprep.subr.mxu0 0.0
        %1355 = vmatpush1.xpose.msra.mxu0 %v1311
        %1356 = vmatprep.subr.mxu0 0.0
        %1357 = vmatpush1.xpose.msra.mxu0 %v1310
        %1358 = vmatprep.subr.mxu0 0.0
        %1359 = vmatpush2.xpose.msra.mxu0 0.0
        %1360 = vmatprep.subr.mxu0 0.0
        %1361 = vmatpush2.xpose.msra.mxu0 0.0
        %1362 = vmatprep.subr.mxu0 0.0
        %1363 = vmatpush2.xpose.msra.mxu0 0.0
        %1364 = vmatprep.subr.mxu0 0.0
        %1365 = vmatpush2.xpose.msra.mxu0 0.0
        %1366 = vmatprep.subr.mxu0 0.0
        %1367 = vmatpush2.xpose.msra.mxu0 0.0
        %1368 = vmatprep.subr.mxu0 0.0
        %1369 = vmatpush2.xpose.msra.mxu0 0.0
        %1370 = vmatprep.subr.mxu0 0.0
        %1371 = vmatpush2.xpose.msra.mxu0 0.0
        %1372 = vmatprep.subr.mxu0 0.0
        %1373 = vmatpush2.xpose.msra.mxu0 0.0
        %1374 = vmatprep.subr.mxu0 0.0
        %1375 = vmatpush2.xpose.msra.mxu0 0.0
        %1376 = vmatprep.subr.mxu0 0.0
        %1377 = vmatpush2.xpose.msra.mxu0 0.0
        %1378 = vmatprep.subr.mxu0 0.0
        %1379 = vmatpush2.xpose.msra.mxu0 0.0
        %1380 = vmatprep.subr.mxu0 0.0
        %1381 = vmatpush2.xpose.msra.mxu0 0.0
        %1382 = vmatprep.subr.mxu0 0.0
        %1383 = vmatpush2.xpose.msra.mxu0 0.0
        %1384 = vmatprep.subr.mxu0 0.0
        %1385 = vmatpush2.xpose.msra.mxu0 0.0
        %1386 = vmatprep.subr.mxu0 0.0
        %1387 = vmatpush2.xpose.msra.mxu0 0.0
        %1388 = vmatprep.subr.mxu0 0.0
        %1389 = vmatpush2.xpose.msra.mxu0 0.0
        %1390 = vmatprep.mubr.f32.mxu0 0.0
        %1391 = vmatmul.mubr.f32.gmra.mxu0 %v1246
        %v1392 = vpop.f32.mrf.mxu0
        %v1393 = vadd.f32 0.0, %v1392
        %v1394 = vpop.f32.mrf.mxu0
        %1395 = vmatprep.mubr.f32.mxu0 0.0
        %1396 = vmatmul.mubr.f32.gmra.mxu0 %v1247
        %v1397 = vpop.f32.mrf.mxu0
        %v1398 = vadd.f32 0.0, %v1397
        %v1399 = vpop.f32.mrf.mxu0
        %1400 = vmatprep.mubr.f32.mxu0 0.0
        %1401 = vmatmul.mubr.f32.gmra.mxu0 %v1248
        %v1402 = vpop.f32.mrf.mxu0
        %v1403 = vadd.f32 0.0, %v1402
        %v1404 = vpop.f32.mrf.mxu0
        %1405 = vmatprep.mubr.f32.mxu0 0.0
        %1406 = vmatmul.mubr.f32.gmra.mxu0 %v1249
        %v1407 = vpop.f32.mrf.mxu0
        %v1408 = vadd.f32 0.0, %v1407
        %v1409 = vpop.f32.mrf.mxu0
        %1410 = vmatprep.mubr.f32.mxu0 0.0
        %1411 = vmatmul.mubr.f32.gmra.mxu0 %v1250
        %v1412 = vpop.f32.mrf.mxu0
        %v1413 = vadd.f32 0.0, %v1412
        %v1414 = vpop.f32.mrf.mxu0
        %1415 = vmatprep.mubr.f32.mxu0 0.0
        %1416 = vmatmul.mubr.f32.gmra.mxu0 %v1251
        %v1417 = vpop.f32.mrf.mxu0
        %v1418 = vadd.f32 0.0, %v1417
        %v1419 = vpop.f32.mrf.mxu0
        %1420 = vmatprep.mubr.f32.mxu0 0.0
        %1421 = vmatmul.mubr.f32.gmra.mxu0 %v1252
        %v1422 = vpop.f32.mrf.mxu0
        %v1423 = vadd.f32 0.0, %v1422
        %v1424 = vpop.f32.mrf.mxu0
        %1425 = vmatprep.mubr.f32.mxu0 0.0
        %1426 = vmatmul.mubr.f32.gmra.mxu0 %v1253
        %v1427 = vpop.f32.mrf.mxu0
        %v1428 = vadd.f32 0.0, %v1427
        %v1429 = vpop.f32.mrf.mxu0
        %1430 = vmatprep.mubr.f32.mxu0 0.0
        %1431 = vmatmul.mubr.f32.gmra.mxu0 %v1254
        %v1432 = vpop.f32.mrf.mxu0
        %v1433 = vadd.f32 0.0, %v1432
        %v1434 = vpop.f32.mrf.mxu0
        %1435 = vmatprep.mubr.f32.mxu0 0.0
        %1436 = vmatmul.mubr.f32.gmra.mxu0 %v1255
        %v1437 = vpop.f32.mrf.mxu0
        %v1438 = vadd.f32 0.0, %v1437
        %v1439 = vpop.f32.mrf.mxu0
        %1440 = vmatprep.mubr.f32.mxu0 0.0
        %1441 = vmatmul.mubr.f32.gmra.mxu0 %v1256
        %v1442 = vpop.f32.mrf.mxu0
        %v1443 = vadd.f32 0.0, %v1442
        %v1444 = vpop.f32.mrf.mxu0
        %1445 = vmatprep.mubr.f32.mxu0 0.0
        %1446 = vmatmul.mubr.f32.gmra.mxu0 %v1257
        %v1447 = vpop.f32.mrf.mxu0
        %v1448 = vadd.f32 0.0, %v1447
        %v1449 = vpop.f32.mrf.mxu0
        %1450 = vmatprep.mubr.f32.mxu0 0.0
        %1451 = vmatmul.mubr.f32.gmra.mxu0 %v1258
        %v1452 = vpop.f32.mrf.mxu0
        %v1453 = vadd.f32 0.0, %v1452
        %v1454 = vpop.f32.mrf.mxu0
        %1455 = vmatprep.mubr.f32.mxu0 0.0
        %1456 = vmatmul.mubr.f32.gmra.mxu0 %v1259
        %v1457 = vpop.f32.mrf.mxu0
        %v1458 = vadd.f32 0.0, %v1457
        %v1459 = vpop.f32.mrf.mxu0
        %1460 = vmatprep.mubr.f32.mxu0 0.0
        %1461 = vmatmul.mubr.f32.gmra.mxu0 %v1260
        %v1462 = vpop.f32.mrf.mxu0
        %v1463 = vadd.f32 0.0, %v1462
        %v1464 = vpop.f32.mrf.mxu0
        %1465 = vmatprep.mubr.f32.mxu0 0.0
        %1466 = vmatmul.mubr.f32.gmra.mxu0 %v1261
        %v1467 = vpop.f32.mrf.mxu0
        %v1468 = vadd.f32 0.0, %v1467
        %v1469 = vpop.f32.mrf.mxu0
        %1470 = vmatprep.mubr.f32.mxu0 0.0
        %1471 = vmatmul.mubr.f32.gmra.mxu0 %v1262
        %v1472 = vpop.f32.mrf.mxu0
        %v1473 = vadd.f32 0.0, %v1472
        %v1474 = vpop.f32.mrf.mxu0
        %1475 = vmatprep.mubr.f32.mxu0 0.0
        %1476 = vmatmul.mubr.f32.gmra.mxu0 %v1263
        %v1477 = vpop.f32.mrf.mxu0
        %v1478 = vadd.f32 0.0, %v1477
        %v1479 = vpop.f32.mrf.mxu0
        %1480 = vmatprep.mubr.f32.mxu0 0.0
        %1481 = vmatmul.mubr.f32.gmra.mxu0 %v1264
        %v1482 = vpop.f32.mrf.mxu0
        %v1483 = vadd.f32 0.0, %v1482
        %v1484 = vpop.f32.mrf.mxu0
        %1485 = vmatprep.mubr.f32.mxu0 0.0
        %1486 = vmatmul.mubr.f32.gmra.mxu0 %v1265
        %v1487 = vpop.f32.mrf.mxu0
        %v1488 = vadd.f32 0.0, %v1487
        %v1489 = vpop.f32.mrf.mxu0
        %1490 = vmatprep.mubr.f32.mxu0 0.0
        %1491 = vmatmul.mubr.f32.gmra.mxu0 %v1266
        %v1492 = vpop.f32.mrf.mxu0
        %v1493 = vadd.f32 0.0, %v1492
        %v1494 = vpop.f32.mrf.mxu0
        %1495 = vmatprep.mubr.f32.mxu0 0.0
        %1496 = vmatmul.mubr.f32.gmra.mxu0 %v1267
        %v1497 = vpop.f32.mrf.mxu0
        %v1498 = vadd.f32 0.0, %v1497
        %v1499 = vpop.f32.mrf.mxu0
        %1500 = vmatprep.mubr.f32.mxu0 0.0
        %1501 = vmatmul.mubr.f32.gmra.mxu0 %v1268
        %v1502 = vpop.f32.mrf.mxu0
        %v1503 = vadd.f32 0.0, %v1502
        %v1504 = vpop.f32.mrf.mxu0
        %1505 = vmatprep.mubr.f32.mxu0 0.0
        %1506 = vmatmul.mubr.f32.gmra.mxu0 %v1269
        %v1507 = vpop.f32.mrf.mxu0
        %v1508 = vadd.f32 0.0, %v1507
        %v1509 = vpop.f32.mrf.mxu0
        %1510 = vmatprep.mubr.f32.mxu0 0.0
        %1511 = vmatmul.mubr.f32.gmra.mxu0 %v1270
        %v1512 = vpop.f32.mrf.mxu0
        %v1513 = vadd.f32 0.0, %v1512
        %v1514 = vpop.f32.mrf.mxu0
        %1515 = vmatprep.mubr.f32.mxu0 0.0
        %1516 = vmatmul.mubr.f32.gmra.mxu0 %v1271
        %v1517 = vpop.f32.mrf.mxu0
        %v1518 = vadd.f32 0.0, %v1517
        %v1519 = vpop.f32.mrf.mxu0
        %1520 = vmatprep.mubr.f32.mxu0 0.0
        %1521 = vmatmul.mubr.f32.gmra.mxu0 %v1272
        %v1522 = vpop.f32.mrf.mxu0
        %v1523 = vadd.f32 0.0, %v1522
        %v1524 = vpop.f32.mrf.mxu0
        %1525 = vmatprep.mubr.f32.mxu0 0.0
        %1526 = vmatmul.mubr.f32.gmra.mxu0 %v1273
        %v1527 = vpop.f32.mrf.mxu0
        %v1528 = vadd.f32 0.0, %v1527
        %v1529 = vpop.f32.mrf.mxu0
        %1530 = vmatprep.mubr.f32.mxu0 0.0
        %1531 = vmatmul.mubr.f32.gmra.mxu0 %v1274
        %v1532 = vpop.f32.mrf.mxu0
        %v1533 = vadd.f32 0.0, %v1532
        %v1534 = vpop.f32.mrf.mxu0
        %1535 = vmatprep.mubr.f32.mxu0 0.0
        %1536 = vmatmul.mubr.f32.gmra.mxu0 %v1275
        %v1537 = vpop.f32.mrf.mxu0
        %v1538 = vadd.f32 0.0, %v1537
        %v1539 = vpop.f32.mrf.mxu0
        %1540 = vmatprep.mubr.f32.mxu0 0.0
        %1541 = vmatmul.mubr.f32.gmra.mxu0 %v1276
        %v1542 = vpop.f32.mrf.mxu0
        %v1543 = vadd.f32 0.0, %v1542
        %v1544 = vpop.f32.mrf.mxu0
        %1545 = vmatprep.mubr.f32.mxu0 0.0
        %1546 = vmatmul.mubr.f32.gmra.mxu0 %v1277
        %v1547 = vpop.f32.mrf.mxu0
        %v1548 = vadd.f32 0.0, %v1547
        %v1549 = vpop.f32.mrf.mxu0
        %1550 = vdwg.mxu0
        %v1551 = vadd.f32 %v1278, %v1393
        %v1552 = vadd.f32 %v1279, %v1398
        %v1553 = vadd.f32 %v1280, %v1403
        %v1554 = vadd.f32 %v1281, %v1408
        %v1555 = vadd.f32 %v1282, %v1413
        %v1556 = vadd.f32 %v1283, %v1418
        %v1557 = vadd.f32 %v1284, %v1423
        %v1558 = vadd.f32 %v1285, %v1428
        %v1559 = vadd.f32 %v1286, %v1433
        %v1560 = vadd.f32 %v1287, %v1438
        %v1561 = vadd.f32 %v1288, %v1443
        %v1562 = vadd.f32 %v1289, %v1448
        %v1563 = vadd.f32 %v1290, %v1453
        %v1564 = vadd.f32 %v1291, %v1458
        %v1565 = vadd.f32 %v1292, %v1463
        %v1566 = vadd.f32 %v1293, %v1468
        %v1567 = vadd.f32 %v1294, %v1473
        %v1568 = vadd.f32 %v1295, %v1478
        %v1569 = vadd.f32 %v1296, %v1483
        %v1570 = vadd.f32 %v1297, %v1488
        %v1571 = vadd.f32 %v1298, %v1493
        %v1572 = vadd.f32 %v1299, %v1498
        %v1573 = vadd.f32 %v1300, %v1503
        %v1574 = vadd.f32 %v1301, %v1508
        %v1575 = vadd.f32 %v1302, %v1513
        %v1576 = vadd.f32 %v1303, %v1518
        %v1577 = vadd.f32 %v1304, %v1523
        %v1578 = vadd.f32 %v1305, %v1528
        %v1579 = vadd.f32 %v1306, %v1533
        %v1580 = vadd.f32 %v1307, %v1538
        %v1581 = vadd.f32 %v1308, %v1543
        %v1582 = vadd.f32 %v1309, %v1548
        %1583 = vst [vmem:[#allocation2] sm:$0xff] %v1551
        %1584 = vst [vmem:[#allocation2 + $0x8] sm:$0xff] %v1552
        %1585 = vst [vmem:[#allocation2 + $0x10] sm:$0xff] %v1553
        %1586 = vst [vmem:[#allocation2 + $0x18] sm:$0xff] %v1554
        %1587 = vst [vmem:[#allocation2 + $0x20] sm:$0xff] %v1555
        %1588 = vst [vmem:[#allocation2 + $0x28] sm:$0xff] %v1556
        %1589 = vst [vmem:[#allocation2 + $0x30] sm:$0xff] %v1557
        %1590 = vst [vmem:[#allocation2 + $0x38] sm:$0xff] %v1558
        %1591 = vst [vmem:[#allocation2 + $0x40] sm:$0xff] %v1559
        %1592 = vst [vmem:[#allocation2 + $0x48] sm:$0xff] %v1560
        %1593 = vst [vmem:[#allocation2 + $0x50] sm:$0xff] %v1561
        %1594 = vst [vmem:[#allocation2 + $0x58] sm:$0xff] %v1562
        %1595 = vst [vmem:[#allocation2 + $0x60] sm:$0xff] %v1563
        %1596 = vst [vmem:[#allocation2 + $0x68] sm:$0xff] %v1564
        %1597 = vst [vmem:[#allocation2 + $0x70] sm:$0xff] %v1565
        %1598 = vst [vmem:[#allocation2 + $0x78] sm:$0xff] %v1566
        %1599 = vst [vmem:[#allocation2 + $0x80] sm:$0xff] %v1567
        %1600 = vst [vmem:[#allocation2 + $0x88] sm:$0xff] %v1568
        %1601 = vst [vmem:[#allocation2 + $0x90] sm:$0xff] %v1569
        %1602 = vst [vmem:[#allocation2 + $0x98] sm:$0xff] %v1570
        %1603 = vst [vmem:[#allocation2 + $0xa0] sm:$0xff] %v1571
        %1604 = vst [vmem:[#allocation2 + $0xa8] sm:$0xff] %v1572
        %1605 = vst [vmem:[#allocation2 + $0xb0] sm:$0xff] %v1573
        %1606 = vst [vmem:[#allocation2 + $0xb8] sm:$0xff] %v1574
        %1607 = vst [vmem:[#allocation2 + $0xc0] sm:$0xff] %v1575
        %1608 = vst [vmem:[#allocation2 + $0xc8] sm:$0xff] %v1576
        %1609 = vst [vmem:[#allocation2 + $0xd0] sm:$0xff] %v1577
        %1610 = vst [vmem:[#allocation2 + $0xd8] sm:$0xff] %v1578
        %1611 = vst [vmem:[#allocation2 + $0xe0] sm:$0xff] %v1579
        %1612 = vst [vmem:[#allocation2 + $0xe8] sm:$0xff] %v1580
        %1613 = vst [vmem:[#allocation2 + $0xf0] sm:$0xff] %v1581
        %1614 = vst [vmem:[#allocation2 + $0xf8] sm:$0xff] %v1582
        %p1615 = scmp.eq.s32.totalorder %s31, 1
        // Predicated region
        $region73: #{tpu_custom_call.1} parent=47 // pred_check
          %p1616 = pneg %p1615
        $region74: #{tpu_custom_call.1} parent=47 // pred_check_branch
          %1618 = sbr.rel (%p1616) target = $region76
        $region75: #{tpu_custom_call.1} parent=47 // pred_region
          %v1619 = vld [vmem:[#allocation2] sm:$0xff]
          %v1620 = vld [vmem:[#allocation2 + $0x8] sm:$0xff]
          %v1621 = vld [vmem:[#allocation2 + $0x10] sm:$0xff]
          %v1622 = vld [vmem:[#allocation2 + $0x18] sm:$0xff]
          %v1623 = vld [vmem:[#allocation2 + $0x20] sm:$0xff]
          %v1624 = vld [vmem:[#allocation2 + $0x28] sm:$0xff]
          %v1625 = vld [vmem:[#allocation2 + $0x30] sm:$0xff]
          %v1626 = vld [vmem:[#allocation2 + $0x38] sm:$0xff]
          %v1627 = vld [vmem:[#allocation2 + $0x40] sm:$0xff]
          %v1628 = vld [vmem:[#allocation2 + $0x48] sm:$0xff]
          %v1629 = vld [vmem:[#allocation2 + $0x50] sm:$0xff]
          %v1630 = vld [vmem:[#allocation2 + $0x58] sm:$0xff]
          %v1631 = vld [vmem:[#allocation2 + $0x60] sm:$0xff]
          %v1632 = vld [vmem:[#allocation2 + $0x68] sm:$0xff]
          %v1633 = vld [vmem:[#allocation2 + $0x70] sm:$0xff]
          %v1634 = vld [vmem:[#allocation2 + $0x78] sm:$0xff]
          %v1635 = vld [vmem:[#allocation2 + $0x80] sm:$0xff]
          %v1636 = vld [vmem:[#allocation2 + $0x88] sm:$0xff]
          %v1637 = vld [vmem:[#allocation2 + $0x90] sm:$0xff]
          %v1638 = vld [vmem:[#allocation2 + $0x98] sm:$0xff]
          %v1639 = vld [vmem:[#allocation2 + $0xa0] sm:$0xff]
          %v1640 = vld [vmem:[#allocation2 + $0xa8] sm:$0xff]
          %v1641 = vld [vmem:[#allocation2 + $0xb0] sm:$0xff]
          %v1642 = vld [vmem:[#allocation2 + $0xb8] sm:$0xff]
          %v1643 = vld [vmem:[#allocation2 + $0xc0] sm:$0xff]
          %v1644 = vld [vmem:[#allocation2 + $0xc8] sm:$0xff]
          %v1645 = vld [vmem:[#allocation2 + $0xd0] sm:$0xff]
          %v1646 = vld [vmem:[#allocation2 + $0xd8] sm:$0xff]
          %v1647 = vld [vmem:[#allocation2 + $0xe0] sm:$0xff]
          %v1648 = vld [vmem:[#allocation2 + $0xe8] sm:$0xff]
          %v1649 = vld [vmem:[#allocation2 + $0xf0] sm:$0xff]
          %v1650 = vld [vmem:[#allocation2 + $0xf8] sm:$0xff]
          %v1651 = vld [vmem:[%s6] sm:$0x1]
          %v1653 = vlaneseq
          %v1654 = vshrl.u32 %v1653, 7
          %v1655 = vsub.s32 0, %v1654
          %v1656 = vrot.slane %v1651, %v1655
          %v1658 = vadd.f32 %v1619, %v1656
          %v1659 = vadd.f32 %v1620, %v1656
          %v1660 = vadd.f32 %v1621, %v1656
          %v1661 = vadd.f32 %v1622, %v1656
          %v1662 = vadd.f32 %v1623, %v1656
          %v1663 = vadd.f32 %v1624, %v1656
          %v1664 = vadd.f32 %v1625, %v1656
          %v1665 = vadd.f32 %v1626, %v1656
          %v1666 = vadd.f32 %v1627, %v1656
          %v1667 = vadd.f32 %v1628, %v1656
          %v1668 = vadd.f32 %v1629, %v1656
          %v1669 = vadd.f32 %v1630, %v1656
          %v1670 = vadd.f32 %v1631, %v1656
          %v1671 = vadd.f32 %v1632, %v1656
          %v1672 = vadd.f32 %v1633, %v1656
          %v1673 = vadd.f32 %v1634, %v1656
          %v1674 = vadd.f32 %v1635, %v1656
          %v1675 = vadd.f32 %v1636, %v1656
          %v1676 = vadd.f32 %v1637, %v1656
          %v1677 = vadd.f32 %v1638, %v1656
          %v1678 = vadd.f32 %v1639, %v1656
          %v1679 = vadd.f32 %v1640, %v1656
          %v1680 = vadd.f32 %v1641, %v1656
          %v1681 = vadd.f32 %v1642, %v1656
          %v1682 = vadd.f32 %v1643, %v1656
          %v1683 = vadd.f32 %v1644, %v1656
          %v1684 = vadd.f32 %v1645, %v1656
          %v1685 = vadd.f32 %v1646, %v1656
          %v1686 = vadd.f32 %v1647, %v1656
          %v1687 = vadd.f32 %v1648, %v1656
          %v1688 = vadd.f32 %v1649, %v1656
          %v1689 = vadd.f32 %v1650, %v1656
          %v1690 = vadd.f32 %v1658, %v494
          %v1691 = vadd.f32 %v1659, %v495
          %v1692 = vadd.f32 %v1660, %v496
          %v1693 = vadd.f32 %v1661, %v497
          %v1694 = vadd.f32 %v1662, %v498
          %v1695 = vadd.f32 %v1663, %v499
          %v1696 = vadd.f32 %v1664, %v500
          %v1697 = vadd.f32 %v1665, %v501
          %v1698 = vadd.f32 %v1666, %v502
          %v1699 = vadd.f32 %v1667, %v503
          %v1700 = vadd.f32 %v1668, %v504
          %v1701 = vadd.f32 %v1669, %v505
          %v1702 = vadd.f32 %v1670, %v506
          %v1703 = vadd.f32 %v1671, %v507
          %v1704 = vadd.f32 %v1672, %v508
          %v1705 = vadd.f32 %v1673, %v509
          %v1706 = vadd.f32 %v1674, %v510
          %v1707 = vadd.f32 %v1675, %v511
          %v1708 = vadd.f32 %v1676, %v512
          %v1709 = vadd.f32 %v1677, %v513
          %v1710 = vadd.f32 %v1678, %v514
          %v1711 = vadd.f32 %v1679, %v515
          %v1712 = vadd.f32 %v1680, %v516
          %v1713 = vadd.f32 %v1681, %v517
          %v1714 = vadd.f32 %v1682, %v518
          %v1715 = vadd.f32 %v1683, %v519
          %v1716 = vadd.f32 %v1684, %v520
          %v1717 = vadd.f32 %v1685, %v521
          %v1718 = vadd.f32 %v1686, %v522
          %v1719 = vadd.f32 %v1687, %v523
          %v1720 = vadd.f32 %v1688, %v524
          %v1721 = vadd.f32 %v1689, %v525
          %1722 = vst [vmem:[#allocation12] sm:$0xff] %v1690
          %1723 = vst [vmem:[#allocation12 + $0x8] sm:$0xff] %v1691
          %1724 = vst [vmem:[#allocation12 + $0x10] sm:$0xff] %v1692
          %1725 = vst [vmem:[#allocation12 + $0x18] sm:$0xff] %v1693
          %1726 = vst [vmem:[#allocation12 + $0x20] sm:$0xff] %v1694
          %1727 = vst [vmem:[#allocation12 + $0x28] sm:$0xff] %v1695
          %1728 = vst [vmem:[#allocation12 + $0x30] sm:$0xff] %v1696
          %1729 = vst [vmem:[#allocation12 + $0x38] sm:$0xff] %v1697
          %1730 = vst [vmem:[#allocation12 + $0x40] sm:$0xff] %v1698
          %1731 = vst [vmem:[#allocation12 + $0x48] sm:$0xff] %v1699
          %1732 = vst [vmem:[#allocation12 + $0x50] sm:$0xff] %v1700
          %1733 = vst [vmem:[#allocation12 + $0x58] sm:$0xff] %v1701
          %1734 = vst [vmem:[#allocation12 + $0x60] sm:$0xff] %v1702
          %1735 = vst [vmem:[#allocation12 + $0x68] sm:$0xff] %v1703
          %1736 = vst [vmem:[#allocation12 + $0x70] sm:$0xff] %v1704
          %1737 = vst [vmem:[#allocation12 + $0x78] sm:$0xff] %v1705
          %1738 = vst [vmem:[#allocation12 + $0x80] sm:$0xff] %v1706
          %1739 = vst [vmem:[#allocation12 + $0x88] sm:$0xff] %v1707
          %1740 = vst [vmem:[#allocation12 + $0x90] sm:$0xff] %v1708
          %1741 = vst [vmem:[#allocation12 + $0x98] sm:$0xff] %v1709
          %1742 = vst [vmem:[#allocation12 + $0xa0] sm:$0xff] %v1710
          %1743 = vst [vmem:[#allocation12 + $0xa8] sm:$0xff] %v1711
          %1744 = vst [vmem:[#allocation12 + $0xb0] sm:$0xff] %v1712
          %1745 = vst [vmem:[#allocation12 + $0xb8] sm:$0xff] %v1713
          %1746 = vst [vmem:[#allocation12 + $0xc0] sm:$0xff] %v1714
          %1747 = vst [vmem:[#allocation12 + $0xc8] sm:$0xff] %v1715
          %1748 = vst [vmem:[#allocation12 + $0xd0] sm:$0xff] %v1716
          %1749 = vst [vmem:[#allocation12 + $0xd8] sm:$0xff] %v1717
          %1750 = vst [vmem:[#allocation12 + $0xe0] sm:$0xff] %v1718
          %1751 = vst [vmem:[#allocation12 + $0xe8] sm:$0xff] %v1719
          %1752 = vst [vmem:[#allocation12 + $0xf0] sm:$0xff] %v1720
          %1753 = vst [vmem:[#allocation12 + $0xf8] sm:$0xff] %v1721
        $region76: #{tpu_custom_call.1} parent=47 // pred_fallthru
          _
        // Predicated region
        $region77: #{tpu_custom_call.1} parent=47 // pred_check
          %p1754 = pneg %p237
        $region78: #{tpu_custom_call.1} parent=47 // pred_check_branch
          %1756 = sbr.rel (%p1754) target = $region80
        $region79: #{tpu_custom_call.1} parent=47 // pred_region
          %s1757 = smul.u32 32, %s30
          %s1759 = ssub.s32 4096, 4096
          %1760 = vsyncadd [#allocation5], %s1759
          %s1761 = smul.addr %s1757, 128
          %s1762 = scalar_lea.hbm %s7, %s1761
          %s1763 = sshll.u32 [#allocation12], 4
          %s1764 = int_to_ptr.vmem [resolvable:$true] %s1763
          %1769 = dma.vmem_to_hbm [thread:$0]  %s1764, 4096, %s1762, [#allocation5], 128, 128, 8
        $region80: #{tpu_custom_call.1} parent=47 // pred_fallthru
          _
        // Predicated region
        $region81: #{tpu_custom_call.1} parent=47 // pred_check
          %p1770 = pneg %p237
        $region82: #{tpu_custom_call.1} parent=47 // pred_check_branch
          %1772 = sbr.rel (%p1770) target = $region84
        $region83: #{tpu_custom_call.1} parent=47 // pred_region
          %1773 = dma.done [#allocation5], 4096
        $region84: #{tpu_custom_call.1} parent=47 // pred_fallthru
          _
      $region48: #{tpu_custom_call.1} parent=5 // pred_fallthru
        _
      %p1774 = scmp.le.s32.totalorder 2, %s21
      // Predicated region
      $region85: #{tpu_custom_call.1} parent=5 // pred_check
        %p1775 = pneg %p1774
      $region86: #{tpu_custom_call.1} parent=5 // pred_check_branch
        %1777 = sbr.rel (%p1775) target = $region88
      $region87: #{tpu_custom_call.1} parent=5 // pred_region
        %s1778 = ssub.s32 %s21, 2
      $region88: #{tpu_custom_call.1} parent=5 // pred_fallthru
        _
    $region6: #{tpu_custom_call.1} parent=1 // loop_footer
      %s25 = sadd.s32 1, %s21
    $region7: #{tpu_custom_call.1} parent=1 // loop_footer_branch
      %20 = sbr.rel target = $region3
    $region8: #{tpu_custom_call.1} parent=1 // loop_exit
      _
    %1779 = vsyncpa [#allocation4], 1
    %s1780 = scalar_lea.sflag [#allocation4], 1
    %1781 = vsyncpa %s1780, 1
    %1782 = vsyncpa [#allocation7], 1
    %s1783 = scalar_lea.sflag [#allocation7], 1
    %1784 = vsyncpa %s1783, 1
    %1785 = vsyncpa [#allocation10], 1
    %s1786 = scalar_lea.sflag [#allocation10], 1
    %1787 = vsyncpa %s1786, 1
    %1788 = vsyncpa [#allocation5], 1
    %s1789 = scalar_lea.sflag [#allocation5], 1
    %1790 = vsyncpa %s1789, 1

</llo_original>
